<compile_context>
chip_gen: v7x
topology: tpu7x:2x2x1
jax: 0.10.0
libtpu: 0.0.40
codegen_flags: <defaults>
</compile_context>

<pallas_src>
import math
import functools

import jax
import jax.numpy as jnp
from jax.experimental import pallas as pl
from jax.experimental.pallas import tpu as pltpu

EPS = 1e-5


def _make_kernel(n_head, head_dim, n_groups, seq, channels, batch_tile):
    C = channels
    S = seq
    G = n_groups
    hd = head_dim
    Bt = batch_tile
    inv_n_per_group = 1.0 / (S * (C // G))

    def kernel(x_ref, gmask_ref, gn_w_ref, gn_b_ref,
               qkv_w_ref, out_w_ref, out_b_ref, o_ref, stage_ref):
        # x is channel-major (Bt, C, S) bf16; upcast once for GroupNorm / residual math.
        xb = x_ref[...].astype(jnp.float32)                  # (Bt, C, S) f32
        gmask = gmask_ref[...]                               # (C, G) one-hot group membership

        # ---- GroupNorm: centered two-pass variance (no E[x^2]-mean^2 cancellation) ----
        ch_sum = jnp.sum(xb, axis=-1)                        # (Bt, C)
        g_mean = jnp.dot(ch_sum, gmask,
                         preferred_element_type=jnp.float32) * inv_n_per_group   # (Bt, G)
        mean_c = jax.lax.dot_general(g_mean, gmask, (((1,), (1,)), ((), ())),
                                     preferred_element_type=jnp.float32)         # (Bt, C)
        d = xb - mean_c[:, :, None]                          # centered
        ch_sq = jnp.sum(d * d, axis=-1)                      # (Bt, C)
        g_var = jnp.dot(ch_sq, gmask,
                        preferred_element_type=jnp.float32) * inv_n_per_group    # (Bt, G)
        var_c = jax.lax.dot_general(g_var, gmask, (((1,), (1,)), ((), ())),
                                    preferred_element_type=jnp.float32)          # (Bt, C)
        xn = d * jax.lax.rsqrt(var_c[:, :, None] + EPS)
        xn = xn * gn_w_ref[...] + gn_b_ref[...]              # per-channel affine, (C,1) broadcast

        w_qkv = qkv_w_ref[...]                               # (3C, C) bf16, Q rows pre-scaled
        w_out = out_w_ref[...]                               # (C, C) bf16
        bias = out_b_ref[...]                                # (C, 1) f32

        # small static Bt / n_head -> unrolled loops are fine; see flash TODO for production S.
        for b in range(Bt):
            xn_b = xn[b].astype(jnp.bfloat16)                # (C, S)
            # qkv 1x1 conv == (3C, C) @ (C, S); single bf16 cast of the result.
            qkv = jnp.dot(w_qkv, xn_b,
                          preferred_element_type=jnp.float32).astype(jnp.bfloat16)  # (3C, S)

            for h in range(n_head):
                q = qkv[h * hd:(h + 1) * hd, :]                          # (hd, S) bf16
                k = qkv[C + h * hd:C + (h + 1) * hd, :]                  # (hd, S) bf16
                v = qkv[2 * C + h * hd:2 * C + (h + 1) * hd, :]          # (hd, S) bf16

                # transposed logits: sT[key, query] = sum_d k[d,key] * q[d,query]
                # (scale already folded into q via the weight; matches torch's /sqrt(channel))
                sT = jax.lax.dot_general(k, q, (((0,), (0,)), ((), ())),
                                         preferred_element_type=jnp.float32)   # (S_k, S_q)
                m = jnp.max(sT, axis=0, keepdims=True)       # (1, S_q)
                e = jnp.exp(sT - m)                           # f32 (S_k, S_q)
                l = jnp.sum(e, axis=0, keepdims=True)         # (1, S_q)
                # unnormalized PV, then normalize the small (hd, S) result on the EUP slot
                pv = jnp.dot(v, e.astype(jnp.bfloat16),
                             preferred_element_type=jnp.float32)               # (hd, S_q)
                pv = pv * pl.reciprocal(l, approx=True)
                # stage this head's rows into the (C, S) bf16 buffer (tile-aligned row block)
                stage_ref[h * hd:(h + 1) * hd, :] = pv.astype(jnp.bfloat16)

            # single full-contraction-depth out projection: (C, C) @ (C, S)
            y = jnp.dot(w_out, stage_ref[...],
                        preferred_element_type=jnp.float32)                     # (C, S) f32
            o_ref[b] = (y + bias + xb[b]).astype(o_ref.dtype)                   # bias + residual

    return kernel


def _vmem_limit_bytes():
    # Derive per generation with headroom: ~3/4 of physical (v7x 64 MiB -> ~48 MiB,
    # v5e/v6e 128 MiB -> ~96 MiB), capped at 110 MiB.
    try:
        cap = pltpu.get_tpu_info().vmem_capacity_bytes
    except Exception:
        cap = 64 * 1024 * 1024
    return int(min(cap * 3 // 4, 110 * 1024 * 1024))


def self_attention_pallas(x_nchw, params, *, n_head, norm_groups, batch_tile=1):
    B, C, H, W = x_nchw.shape
    S = H * W
    hd = C // n_head
    G = norm_groups
    Bt = batch_tile
    assert C % n_head == 0 and C % G == 0
    assert B % Bt == 0, "batch_tile must divide batch"

    gn_w, gn_b, qkv_w, out_w, out_b = params
    scale = 1.0 / math.sqrt(C)   # PyTorch module divides by sqrt(channel), NOT sqrt(head_dim)

    # torch qkv conv weight (3C, C): rows ordered [h0:(q,k,v) | h1:(q,k,v) | ...];
    # permute rows to [Q all heads | K all heads | V all heads] (head-contiguous) and fold
    # the attention scale into the Q rows before the single bf16 cast.
    part = jnp.arange(3)[:, None, None]
    head = jnp.arange(n_head)[None, :, None]
    dd = jnp.arange(hd)[None, None, :]
    old_row = (head * (3 * hd) + part * hd + dd).reshape(-1)   # new row -> old row
    qkv_w_p = jnp.asarray(qkv_w, jnp.float32)[old_row, :]
    row_scale = jnp.concatenate([jnp.full((C,), scale, jnp.float32),
                                 jnp.ones((2 * C,), jnp.float32)])
    qkv_w_p = (qkv_w_p * row_scale[:, None]).astype(jnp.bfloat16)      # (3C, C) bf16
    out_w_m = jnp.asarray(out_w, jnp.float32).astype(jnp.bfloat16)     # (C_out, C_in) bf16

    # one-hot group membership (C, G): channel c belongs to group c // (C // G)
    gmask = (jnp.arange(C)[:, None] // (C // G) == jnp.arange(G)[None, :]).astype(jnp.float32)

    # channel-major: NCHW -> (B, C, S) is a free reshape (no transpose); bf16 halves DMA bytes.
    x_bcs = x_nchw.reshape(B, C, S).astype(jnp.bfloat16)

    kernel = _make_kernel(n_head, hd, G, S, C, Bt)

    y_bcs = pl.pallas_call(
        kernel,
        out_shape=jax.ShapeDtypeStruct((B, C, S), jnp.bfloat16),
        grid=(B // Bt,),
        in_specs=[
            pl.BlockSpec((Bt, C, S), lambda b: (b, 0, 0)),     # x, channel-major bf16
            pl.BlockSpec((C, G), lambda b: (0, 0)),            # group one-hot mask
            pl.BlockSpec((C, 1), lambda b: (0, 0)),            # gn weight
            pl.BlockSpec((C, 1), lambda b: (0, 0)),            # gn bias
            pl.BlockSpec((3 * C, C), lambda b: (0, 0)),        # qkv weight (3C, C) bf16
            pl.BlockSpec((C, C), lambda b: (0, 0)),            # out weight (C, C) bf16
            pl.BlockSpec((C, 1), lambda b: (0, 0)),            # out bias
        ],
        out_specs=pl.BlockSpec((Bt, C, S), lambda b: (b, 0, 0)),
        scratch_shapes=[pltpu.VMEM((C, S), jnp.bfloat16)],     # per-batch head staging buffer
        compiler_params=pltpu.CompilerParams(
            dimension_semantics=("parallel",),
            vmem_limit_bytes=_vmem_limit_bytes()),
    )(x_bcs, gmask,
      jnp.asarray(gn_w, jnp.float32).reshape(C, 1),
      jnp.asarray(gn_b, jnp.float32).reshape(C, 1),
      qkv_w_p, out_w_m,
      jnp.asarray(out_b, jnp.float32).reshape(C, 1))

    return y_bcs.reshape(B, C, H, W)   # free reshape back to NCHW (bf16 activations out)


def self_attention_reference(x, params, *, n_head, norm_groups):
    """Pure-JAX f32 mirror of the PyTorch forward (NCHW), for verification."""
    gn_w, gn_b, qkv_w, out_w, out_b = params
    B, C, H, W = x.shape
    hd = C // n_head
    xg = x.reshape(B, norm_groups, C // norm_groups, H, W)
    mean = xg.mean(axis=(2, 3, 4), keepdims=True)
    var = xg.var(axis=(2, 3, 4), keepdims=True)
    xn = (xg - mean) / jnp.sqrt(var + EPS)
    xn = xn.reshape(B, C, H, W) * gn_w[None, :, None, None] + gn_b[None, :, None, None]
    qkv = jnp.einsum('oc,bchw->bohw', qkv_w, xn).reshape(B, n_head, hd * 3, H, W)
    q, k, v = qkv[:, :, :hd], qkv[:, :, hd:2 * hd], qkv[:, :, 2 * hd:]
    attn = jnp.einsum('bnchw,bncyx->bnhwyx', q, k) / math.sqrt(C)
    attn = attn.reshape(B, n_head, H, W, H * W)
    attn = jax.nn.softmax(attn, axis=-1)
    attn = attn.reshape(B, n_head, H, W, H, W)
    out = jnp.einsum('bnhwyx,bncyx->bnchw', attn, v).reshape(B, C, H, W)
    out = jnp.einsum('oc,bchw->bohw', out_w, out) + out_b[None, :, None, None]
    return out + x


if __name__ == "__main__":
    # small shapes consistent with the module; S = H*W = 256 gives a lane-dense last dim
    B, C, H, W = 2, 32, 16, 16
    n_head = 2
    norm_groups = 8

    key = jax.random.PRNGKey(0)
    k_x, k_gw, k_gb, k_qkv, k_ow, k_ob = jax.random.split(key, 6)

    x = jax.random.normal(k_x, (B, C, H, W), dtype=jnp.float32)

    # torch shapes: GroupNorm affine (C,), qkv conv (3C, C, 1, 1) no bias, out conv (C, C, 1, 1)
    # with bias -- 1x1 conv weights kept as 2-D matrices.
    gn_w = 1.0 + 0.1 * jax.random.normal(k_gw, (C,), dtype=jnp.float32)
    gn_b = 0.1 * jax.random.normal(k_gb, (C,), dtype=jnp.float32)
    qkv_w = jax.random.normal(k_qkv, (3 * C, C), dtype=jnp.float32) * (1.0 / math.sqrt(C))
    out_w = jax.random.normal(k_ow, (C, C), dtype=jnp.float32) * (1.0 / math.sqrt(C))
    out_b = 0.1 * jax.random.normal(k_ob, (C,), dtype=jnp.float32)

    params = (gn_w, gn_b, qkv_w, out_w, out_b)

    y_ref = self_attention_reference(x, params, n_head=n_head, norm_groups=norm_groups)

    # batch_tile=1: per-batch "parallel" grid (>= 2 steps keeps both v7x TensorCores busy);
    # batch_tile=B: whole batch per step (amortizes per-step overhead on single-TC v5e/v6e).
    for bt in (1, B):
        run = jax.jit(functools.partial(self_attention_pallas, n_head=n_head,
                                        norm_groups=norm_groups, batch_tile=bt))
        y = jax.block_until_ready(run(x, params)).astype(jnp.float32)
        assert y.shape == (B, C, H, W)
        err = float(jnp.max(jnp.abs(y - y_ref)))
        # bf16 activation I/O + bf16 MXU operands + approx reciprocal => relaxed tolerance
        assert jnp.allclose(y, y_ref, atol=1e-1, rtol=1e-1), (bt, err)

    print("KERNEL_OK")
</pallas_src>

<mosaic_0001>
module attributes {stable_mosaic.version = 11 : i64} {
  func.func @kernel(%arg0: i32, %arg1: memref<1x32x256xbf16, #tpu.memory_space<vmem>>, %arg2: memref<32x8xf32, #tpu.memory_space<vmem>>, %arg3: memref<32x1xf32, #tpu.memory_space<vmem>>, %arg4: memref<32x1xf32, #tpu.memory_space<vmem>>, %arg5: memref<96x32xbf16, #tpu.memory_space<vmem>>, %arg6: memref<32x32xbf16, #tpu.memory_space<vmem>>, %arg7: memref<32x1xf32, #tpu.memory_space<vmem>>, %arg8: memref<1x32x256xbf16, #tpu.memory_space<vmem>>, %arg9: memref<32x256xbf16, #tpu.memory_space<vmem>>) attributes {dimension_semantics = [#tpu.dimension_semantics<parallel>], iteration_bounds = array<i64: 2>, scalar_prefetch = 0 : i64, scratch_operands = 1 : i64, tpu.core_type = #tpu.core_type<tc>, window_params = [{transform_indices = @transform_0, window_bounds = array<i64: 1, 32, 256>}, {pipeline_mode = #tpu.pipeline_mode<synchronous>, transform_indices = @transform_1, window_bounds = array<i64: 32, 8>}, {pipeline_mode = #tpu.pipeline_mode<synchronous>, transform_indices = @transform_2, window_bounds = array<i64: 32, 1>}, {pipeline_mode = #tpu.pipeline_mode<synchronous>, transform_indices = @transform_3, window_bounds = array<i64: 32, 1>}, {pipeline_mode = #tpu.pipeline_mode<synchronous>, transform_indices = @transform_4, window_bounds = array<i64: 96, 32>}, {pipeline_mode = #tpu.pipeline_mode<synchronous>, transform_indices = @transform_5, window_bounds = array<i64: 32, 32>}, {pipeline_mode = #tpu.pipeline_mode<synchronous>, transform_indices = @transform_6, window_bounds = array<i64: 32, 1>}, {transform_indices = @transform_7, window_bounds = array<i64: 1, 32, 256>}]} {
    %c0 = arith.constant 0 : index
    %c0_0 = arith.constant 0 : index
    %c0_1 = arith.constant 0 : index
    %0 = vector.load %arg1[%c0, %c0_0, %c0_1] : memref<1x32x256xbf16, #tpu.memory_space<vmem>>, vector<1x32x256xbf16>
    %1 = arith.extf %0 : vector<1x32x256xbf16> to vector<1x32x256xf32>
    %c0_2 = arith.constant 0 : index
    %c0_3 = arith.constant 0 : index
    %2 = vector.load %arg2[%c0_2, %c0_3] : memref<32x8xf32, #tpu.memory_space<vmem>>, vector<32x8xf32>
    %cst = arith.constant dense<0.000000e+00> : vector<1x32xf32>
    %3 = vector.multi_reduction <add>, %1, %cst [2] : vector<1x32x256xf32> to vector<1x32xf32>
    %cst_4 = arith.constant dense<0.000000e+00> : vector<1x8xf32>
    %4 = tpu.matmul %3, %2, %cst_4 {dimension_numbers = #tpu.dot_dimension_numbers<[1], [0], [0], [1], [0, 0, 1, 1], [], []>} : vector<1x32xf32>, vector<32x8xf32>, vector<1x8xf32> -> vector<1x8xf32>
    %cst_5 = arith.constant 9.765625E-4 : f32
    %5 = vector.broadcast %cst_5 : f32 to vector<1x8xf32>
    %6 = arith.mulf %4, %5 : vector<1x8xf32>
    %cst_6 = arith.constant dense<0.000000e+00> : vector<1x32xf32>
    %7 = tpu.matmul %6, %2, %cst_6 {dimension_numbers = #tpu.dot_dimension_numbers<[1], [1], [0], [0], [0, 0, 1, 0], [], []>} : vector<1x8xf32>, vector<32x8xf32>, vector<1x32xf32> -> vector<1x32xf32>
    %8 = vector.shape_cast %7 : vector<1x32xf32> to vector<1x32x1xf32>
    %9 = vector.broadcast %8 : vector<1x32x1xf32> to vector<1x32x256xf32>
    %10 = arith.subf %1, %9 : vector<1x32x256xf32>
    %11 = arith.mulf %10, %10 : vector<1x32x256xf32>
    %cst_7 = arith.constant dense<0.000000e+00> : vector<1x32xf32>
    %12 = vector.multi_reduction <add>, %11, %cst_7 [2] : vector<1x32x256xf32> to vector<1x32xf32>
    %cst_8 = arith.constant dense<0.000000e+00> : vector<1x8xf32>
    %13 = tpu.matmul %12, %2, %cst_8 {dimension_numbers = #tpu.dot_dimension_numbers<[1], [0], [0], [1], [0, 0, 1, 1], [], []>} : vector<1x32xf32>, vector<32x8xf32>, vector<1x8xf32> -> vector<1x8xf32>
    %cst_9 = arith.constant 9.765625E-4 : f32
    %14 = vector.broadcast %cst_9 : f32 to vector<1x8xf32>
    %15 = arith.mulf %13, %14 : vector<1x8xf32>
    %cst_10 = arith.constant dense<0.000000e+00> : vector<1x32xf32>
    %16 = tpu.matmul %15, %2, %cst_10 {dimension_numbers = #tpu.dot_dimension_numbers<[1], [1], [0], [0], [0, 0, 1, 0], [], []>} : vector<1x8xf32>, vector<32x8xf32>, vector<1x32xf32> -> vector<1x32xf32>
    %17 = vector.shape_cast %16 : vector<1x32xf32> to vector<1x32x1xf32>
    %cst_11 = arith.constant 9.99999974E-6 : f32
    %18 = vector.broadcast %cst_11 : f32 to vector<1x32x1xf32>
    %19 = arith.addf %17, %18 : vector<1x32x1xf32>
    %20 = math.rsqrt %19 : vector<1x32x1xf32>
    %21 = vector.broadcast %20 : vector<1x32x1xf32> to vector<1x32x256xf32>
    %22 = arith.mulf %10, %21 : vector<1x32x256xf32>
    %c0_12 = arith.constant 0 : index
    %c0_13 = arith.constant 0 : index
    %23 = vector.load %arg3[%c0_12, %c0_13] : memref<32x1xf32, #tpu.memory_space<vmem>>, vector<32x1xf32>
    %24 = vector.shape_cast %23 : vector<32x1xf32> to vector<1x32x1xf32>
    %25 = vector.broadcast %24 : vector<1x32x1xf32> to vector<1x32x256xf32>
    %26 = arith.mulf %22, %25 : vector<1x32x256xf32>
    %c0_14 = arith.constant 0 : index
    %c0_15 = arith.constant 0 : index
    %27 = vector.load %arg4[%c0_14, %c0_15] : memref<32x1xf32, #tpu.memory_space<vmem>>, vector<32x1xf32>
    %28 = vector.shape_cast %27 : vector<32x1xf32> to vector<1x32x1xf32>
    %29 = vector.broadcast %28 : vector<1x32x1xf32> to vector<1x32x256xf32>
    %30 = arith.addf %26, %29 : vector<1x32x256xf32>
    %c0_16 = arith.constant 0 : index
    %c0_17 = arith.constant 0 : index
    %31 = vector.load %arg5[%c0_16, %c0_17] : memref<96x32xbf16, #tpu.memory_space<vmem>>, vector<96x32xbf16>
    %c0_18 = arith.constant 0 : index
    %c0_19 = arith.constant 0 : index
    %32 = vector.load %arg6[%c0_18, %c0_19] : memref<32x32xbf16, #tpu.memory_space<vmem>>, vector<32x32xbf16>
    %c0_20 = arith.constant 0 : index
    %c0_21 = arith.constant 0 : index
    %33 = vector.load %arg7[%c0_20, %c0_21] : memref<32x1xf32, #tpu.memory_space<vmem>>, vector<32x1xf32>
    %34 = vector.shape_cast %30 : vector<1x32x256xf32> to vector<32x256xf32>
    %35 = arith.truncf %34 : vector<32x256xf32> to vector<32x256xbf16>
    %cst_22 = arith.constant dense<0.000000e+00> : vector<96x256xf32>
    %36 = tpu.matmul %31, %35, %cst_22 {dimension_numbers = #tpu.dot_dimension_numbers<[1], [0], [0], [1], [0, 0, 1, 1], [], []>} : vector<96x32xbf16>, vector<32x256xbf16>, vector<96x256xf32> -> vector<96x256xf32>
    %37 = arith.truncf %36 : vector<96x256xf32> to vector<96x256xbf16>
    %38 = vector.extract_strided_slice %37 {offsets = [0, 0], sizes = [16, 256], strides = [1, 1]} : vector<96x256xbf16> to vector<16x256xbf16>
    %39 = vector.extract_strided_slice %37 {offsets = [32, 0], sizes = [16, 256], strides = [1, 1]} : vector<96x256xbf16> to vector<16x256xbf16>
    %40 = vector.extract_strided_slice %37 {offsets = [64, 0], sizes = [16, 256], strides = [1, 1]} : vector<96x256xbf16> to vector<16x256xbf16>
    %cst_23 = arith.constant dense<0.000000e+00> : vector<256x256xf32>
    %41 = tpu.matmul %39, %38, %cst_23 {dimension_numbers = #tpu.dot_dimension_numbers<[0], [0], [1], [1], [0, 1, 1, 1], [], []>} : vector<16x256xbf16>, vector<16x256xbf16>, vector<256x256xf32> -> vector<256x256xf32>
    %cst_24 = arith.constant dense<0xFF800000> : vector<256xf32>
    %42 = vector.multi_reduction <maximumf>, %41, %cst_24 [0] : vector<256x256xf32> to vector<256xf32>
    %43 = vector.shape_cast %42 : vector<256xf32> to vector<1x256xf32>
    %44 = vector.broadcast %43 : vector<1x256xf32> to vector<256x256xf32>
    %45 = arith.subf %41, %44 : vector<256x256xf32>
    %46 = math.exp %45 : vector<256x256xf32>
    %cst_25 = arith.constant dense<0.000000e+00> : vector<256xf32>
    %47 = vector.multi_reduction <add>, %46, %cst_25 [0] : vector<256x256xf32> to vector<256xf32>
    %48 = vector.shape_cast %47 : vector<256xf32> to vector<1x256xf32>
    %49 = arith.truncf %46 : vector<256x256xf32> to vector<256x256xbf16>
    %cst_26 = arith.constant dense<0.000000e+00> : vector<16x256xf32>
    %50 = tpu.matmul %40, %49, %cst_26 {dimension_numbers = #tpu.dot_dimension_numbers<[1], [0], [0], [1], [0, 0, 1, 1], [], []>} : vector<16x256xbf16>, vector<256x256xbf16>, vector<16x256xf32> -> vector<16x256xf32>
    %51 = tpu.reciprocal %48 {approx = true} : vector<1x256xf32> -> vector<1x256xf32>
    %52 = vector.broadcast %51 : vector<1x256xf32> to vector<16x256xf32>
    %53 = arith.mulf %50, %52 : vector<16x256xf32>
    %54 = arith.truncf %53 : vector<16x256xf32> to vector<16x256xbf16>
    %c0_27 = arith.constant 0 : index
    %c0_28 = arith.constant 0 : index
    %55 = vector.load %arg9[%c0_27, %c0_28] : memref<32x256xbf16, #tpu.memory_space<vmem>>, vector<16x256xbf16>
    tpu.vector_store %arg9[%c0_27, %c0_28], %54 {strides = array<i32>} : memref<32x256xbf16, #tpu.memory_space<vmem>>, vector<16x256xbf16>,
    %56 = vector.extract_strided_slice %37 {offsets = [16, 0], sizes = [16, 256], strides = [1, 1]} : vector<96x256xbf16> to vector<16x256xbf16>
    %57 = vector.extract_strided_slice %37 {offsets = [48, 0], sizes = [16, 256], strides = [1, 1]} : vector<96x256xbf16> to vector<16x256xbf16>
    %58 = vector.extract_strided_slice %37 {offsets = [80, 0], sizes = [16, 256], strides = [1, 1]} : vector<96x256xbf16> to vector<16x256xbf16>
    %cst_29 = arith.constant dense<0.000000e+00> : vector<256x256xf32>
    %59 = tpu.matmul %57, %56, %cst_29 {dimension_numbers = #tpu.dot_dimension_numbers<[0], [0], [1], [1], [0, 1, 1, 1], [], []>} : vector<16x256xbf16>, vector<16x256xbf16>, vector<256x256xf32> -> vector<256x256xf32>
    %cst_30 = arith.constant dense<0xFF800000> : vector<256xf32>
    %60 = vector.multi_reduction <maximumf>, %59, %cst_30 [0] : vector<256x256xf32> to vector<256xf32>
    %61 = vector.shape_cast %60 : vector<256xf32> to vector<1x256xf32>
    %62 = vector.broadcast %61 : vector<1x256xf32> to vector<256x256xf32>
    %63 = arith.subf %59, %62 : vector<256x256xf32>
    %64 = math.exp %63 : vector<256x256xf32>
    %cst_31 = arith.constant dense<0.000000e+00> : vector<256xf32>
    %65 = vector.multi_reduction <add>, %64, %cst_31 [0] : vector<256x256xf32> to vector<256xf32>
    %66 = vector.shape_cast %65 : vector<256xf32> to vector<1x256xf32>
    %67 = arith.truncf %64 : vector<256x256xf32> to vector<256x256xbf16>
    %cst_32 = arith.constant dense<0.000000e+00> : vector<16x256xf32>
    %68 = tpu.matmul %58, %67, %cst_32 {dimension_numbers = #tpu.dot_dimension_numbers<[1], [0], [0], [1], [0, 0, 1, 1], [], []>} : vector<16x256xbf16>, vector<256x256xbf16>, vector<16x256xf32> -> vector<16x256xf32>
    %69 = tpu.reciprocal %66 {approx = true} : vector<1x256xf32> -> vector<1x256xf32>
    %70 = vector.broadcast %69 : vector<1x256xf32> to vector<16x256xf32>
    %71 = arith.mulf %68, %70 : vector<16x256xf32>
    %72 = arith.truncf %71 : vector<16x256xf32> to vector<16x256xbf16>
    %c16 = arith.constant 16 : index
    %c0_33 = arith.constant 0 : index
    %73 = vector.load %arg9[%c16, %c0_33] : memref<32x256xbf16, #tpu.memory_space<vmem>>, vector<16x256xbf16>
    tpu.vector_store %arg9[%c16, %c0_33], %72 {strides = array<i32>} : memref<32x256xbf16, #tpu.memory_space<vmem>>, vector<16x256xbf16>,
    %c0_34 = arith.constant 0 : index
    %c0_35 = arith.constant 0 : index
    %74 = vector.load %arg9[%c0_34, %c0_35] : memref<32x256xbf16, #tpu.memory_space<vmem>>, vector<32x256xbf16>
    %cst_36 = arith.constant dense<0.000000e+00> : vector<32x256xf32>
    %75 = tpu.matmul %32, %74, %cst_36 {dimension_numbers = #tpu.dot_dimension_numbers<[1], [0], [0], [1], [0, 0, 1, 1], [], []>} : vector<32x32xbf16>, vector<32x256xbf16>, vector<32x256xf32> -> vector<32x256xf32>
    %76 = vector.broadcast %33 : vector<32x1xf32> to vector<32x256xf32>
    %77 = arith.addf %75, %76 : vector<32x256xf32>
    %78 = vector.shape_cast %1 : vector<1x32x256xf32> to vector<32x256xf32>
    %79 = arith.addf %77, %78 : vector<32x256xf32>
    %80 = arith.truncf %79 : vector<32x256xf32> to vector<32x256xbf16>
    %c0_37 = arith.constant 0 : index
    %c0_38 = arith.constant 0 : index
    %c0_39 = arith.constant 0 : index
    %81 = vector.load %arg8[%c0_37, %c0_38, %c0_39] : memref<1x32x256xbf16, #tpu.memory_space<vmem>>, vector<1x32x256xbf16>
    %82 = vector.shape_cast %81 : vector<1x32x256xbf16> to vector<32x256xbf16>
    %83 = vector.shape_cast %80 : vector<32x256xbf16> to vector<1x32x256xbf16>
    tpu.vector_store %arg8[%c0_37, %c0_38, %c0_39], %83 {strides = array<i32>} : memref<1x32x256xbf16, #tpu.memory_space<vmem>>, vector<1x32x256xbf16>,
    return
  }
  func.func @transform_0(%arg0: i32) -> (i32, i32, i32) {
    %c0_i32 = arith.constant 0 : i32
    %c0_i32_0 = arith.constant 0 : i32
    %c0_i32_1 = arith.constant 0 : i32
    return %arg0, %c0_i32, %c0_i32_0 : i32, i32, i32
  }
  func.func @transform_1(%arg0: i32) -> (i32, i32) {
    %c0_i32 = arith.constant 0 : i32
    %c0_i32_0 = arith.constant 0 : i32
    %c0_i32_1 = arith.constant 0 : i32
    return %c0_i32, %c0_i32_0 : i32, i32
  }
  func.func @transform_2(%arg0: i32) -> (i32, i32) {
    %c0_i32 = arith.constant 0 : i32
    %c0_i32_0 = arith.constant 0 : i32
    %c0_i32_1 = arith.constant 0 : i32
    return %c0_i32, %c0_i32_0 : i32, i32
  }
  func.func @transform_3(%arg0: i32) -> (i32, i32) {
    %c0_i32 = arith.constant 0 : i32
    %c0_i32_0 = arith.constant 0 : i32
    %c0_i32_1 = arith.constant 0 : i32
    return %c0_i32, %c0_i32_0 : i32, i32
  }
  func.func @transform_4(%arg0: i32) -> (i32, i32) {
    %c0_i32 = arith.constant 0 : i32
    %c0_i32_0 = arith.constant 0 : i32
    %c0_i32_1 = arith.constant 0 : i32
    return %c0_i32, %c0_i32_0 : i32, i32
  }
  func.func @transform_5(%arg0: i32) -> (i32, i32) {
    %c0_i32 = arith.constant 0 : i32
    %c0_i32_0 = arith.constant 0 : i32
    %c0_i32_1 = arith.constant 0 : i32
    return %c0_i32, %c0_i32_0 : i32, i32
  }
  func.func @transform_6(%arg0: i32) -> (i32, i32) {
    %c0_i32 = arith.constant 0 : i32
    %c0_i32_0 = arith.constant 0 : i32
    %c0_i32_1 = arith.constant 0 : i32
    return %c0_i32, %c0_i32_0 : i32, i32
  }
  func.func @transform_7(%arg0: i32) -> (i32, i32, i32) {
    %c0_i32 = arith.constant 0 : i32
    %c0_i32_0 = arith.constant 0 : i32
    %c0_i32_1 = arith.constant 0 : i32
    return %arg0, %c0_i32, %c0_i32_0 : i32, i32, i32
  }
}

</mosaic_0001>

<llo_original>
// kernel: self_attention_pallas.1
$region0: #{self_attention_pallas.1}
  #allocation0 [shape = 'u32[]', space=smem, size = 0x4, offset = 0x4, fixed_abs, tag = 'smem constant byte address 0x4 - core index']
  #allocation1 [shape = 'u32[144,128]{1,0:T(1,128)}', space=vmem, size = 0x12000, scoped, tag = 'internal scratch']
  #allocation2 [shape = 'bf16[32,256]{1,0:T(16,128)(2,1)}', space=vmem, size = 0x4000, scoped, tag = 'scratch operand']
  %s0 = inlined_call_operand.vmem [shape: bf16[2,32,256], index: 0, kind: input, shape index: {}]
  %s1 = inlined_call_operand.vmem [shape: f32[32,8], index: 1, kind: input, shape index: {}]
  %s2 = inlined_call_operand.vmem [shape: f32[32,1], index: 2, kind: input, shape index: {}]
  %s3 = inlined_call_operand.vmem [shape: f32[32,1], index: 3, kind: input, shape index: {}]
  %s4 = inlined_call_operand.vmem [shape: bf16[96,32], index: 4, kind: input, shape index: {}]
  %s5 = inlined_call_operand.vmem [shape: bf16[32,32], index: 5, kind: input, shape index: {}]
  %s6 = inlined_call_operand.vmem [shape: f32[32,1], index: 6, kind: input, shape index: {}]
  %s7 = inlined_call_operand.vmem [shape: bf16[2,32,256], index: 7, kind: output, shape index: {}]
  %s8 = sld [smem:[#allocation0]]
  $region61: #{self_attention_pallas.1} parent=0
    _
  %s10 = ssub.s32 1, %s8
  %s11 = scalar_select 0, %s10, %s8
  loop: start=0, step=1, limit=4
  $region2: #{self_attention_pallas.1} parent=0 // loop_pre_header
    _
  $region3: #{self_attention_pallas.1} parent=0 // loop_header
    %s13 = sphi 0, %s17
    %p14 = scmp.ge.s32.totalorder %s13, 4
    %s23 = sphi 0, %s25
    %s26 = sphi 0, %s23
    %s27 = sphi 0, %s26
    %s43 = sphi 0, %s27
    %s47 = sphi 0, %s47
    %s49 = sphi 0, %s47
    %s50 = sphi 0, %s49
    %s64 = sphi 0, %s50
    %s68 = sphi 0, %s68
    %s70 = sphi 0, %s68
    %s71 = sphi 0, %s70
    %s85 = sphi 0, %s71
    %s89 = sphi 0, %s89
    %s91 = sphi 0, %s89
    %s92 = sphi 0, %s91
    %s106 = sphi 0, %s92
    %s110 = sphi 0, %s110
    %s112 = sphi 0, %s110
    %s113 = sphi 0, %s112
    %s127 = sphi 0, %s113
    %s131 = sphi 0, %s131
    %s133 = sphi 0, %s131
    %s134 = sphi 0, %s133
    %s148 = sphi 0, %s134
    %s152 = sphi 0, %s152
    %s154 = sphi 0, %s152
    %s155 = sphi 0, %s154
    %s169 = sphi 0, %s155
    %s175 = sphi 0, %s177
    %s178 = sphi 0, %s175
    %s179 = sphi 0, %s178
    %s195 = sphi 0, %s179
  $region4: #{self_attention_pallas.1} parent=0 // loop_header_branch
    %16 = sbr.rel (%p14) target = $region8
  $region5: #{self_attention_pallas.1} parent=0 // loop_body
    %s18 = ssub.s32 %s13, 1
    %s19 = ssub.s32 %s13, 2
    %s20 = sadd.s32 %s13, 1
    %s21 = ssub.s32 %s13, %s20
    %p22 = scmp.eq.s32.totalorder %s21, 0
    %s24 = sadd.s32 %s23, 1
    %s25 = scalar_select %p22, %s23, %s24
    %p28 = pneg %p22
    %p29 = scmp.eq.s32.totalorder %s13, 1
    %p30 = por %p28, %p29
    %p31 = scmp.ne.s32.totalorder %s23, %s26
    %p32 = scmp.eq.s32.totalorder %s13, 0
    %p33 = por %p31, %p32
    %p34 = scmp.ne.s32.totalorder %s23, %s26
    %p35 = scmp.eq.s32.totalorder %s18, 1
    %p36 = por %p34, %p35
    %p37 = scmp.ne.s32.totalorder %s26, %s27
    %p38 = scmp.eq.s32.totalorder %s18, 0
    %p39 = por %p37, %p38
    %p40 = scmp.ne.s32.totalorder %s26, %s27
    %p41 = scmp.eq.s32.totalorder %s19, 1
    %p42 = por %p40, %p41
    %p44 = scmp.ne.s32.totalorder %s27, %s43
    %p45 = scmp.eq.s32.totalorder %s19, 0
    %p46 = por %p44, %p45
    %s48 = sadd.s32 %s47, 1
    %p51 = scmp.eq.s32.totalorder %s13, 1
    %p52 = scmp.ne.s32.totalorder %s47, %s49
    %p53 = scmp.eq.s32.totalorder %s13, 0
    %p54 = por %p52, %p53
    %p55 = scmp.ne.s32.totalorder %s47, %s49
    %p56 = scmp.eq.s32.totalorder %s18, 1
    %p57 = por %p55, %p56
    %p58 = scmp.ne.s32.totalorder %s49, %s50
    %p59 = scmp.eq.s32.totalorder %s18, 0
    %p60 = por %p58, %p59
    %p61 = scmp.ne.s32.totalorder %s49, %s50
    %p62 = scmp.eq.s32.totalorder %s19, 1
    %p63 = por %p61, %p62
    %p65 = scmp.ne.s32.totalorder %s50, %s64
    %p66 = scmp.eq.s32.totalorder %s19, 0
    %p67 = por %p65, %p66
    %s69 = sadd.s32 %s68, 1
    %p72 = scmp.eq.s32.totalorder %s13, 1
    %p73 = scmp.ne.s32.totalorder %s68, %s70
    %p74 = scmp.eq.s32.totalorder %s13, 0
    %p75 = por %p73, %p74
    %p76 = scmp.ne.s32.totalorder %s68, %s70
    %p77 = scmp.eq.s32.totalorder %s18, 1
    %p78 = por %p76, %p77
    %p79 = scmp.ne.s32.totalorder %s70, %s71
    %p80 = scmp.eq.s32.totalorder %s18, 0
    %p81 = por %p79, %p80
    %p82 = scmp.ne.s32.totalorder %s70, %s71
    %p83 = scmp.eq.s32.totalorder %s19, 1
    %p84 = por %p82, %p83
    %p86 = scmp.ne.s32.totalorder %s71, %s85
    %p87 = scmp.eq.s32.totalorder %s19, 0
    %p88 = por %p86, %p87
    %s90 = sadd.s32 %s89, 1
    %p93 = scmp.eq.s32.totalorder %s13, 1
    %p94 = scmp.ne.s32.totalorder %s89, %s91
    %p95 = scmp.eq.s32.totalorder %s13, 0
    %p96 = por %p94, %p95
    %p97 = scmp.ne.s32.totalorder %s89, %s91
    %p98 = scmp.eq.s32.totalorder %s18, 1
    %p99 = por %p97, %p98
    %p100 = scmp.ne.s32.totalorder %s91, %s92
    %p101 = scmp.eq.s32.totalorder %s18, 0
    %p102 = por %p100, %p101
    %p103 = scmp.ne.s32.totalorder %s91, %s92
    %p104 = scmp.eq.s32.totalorder %s19, 1
    %p105 = por %p103, %p104
    %p107 = scmp.ne.s32.totalorder %s92, %s106
    %p108 = scmp.eq.s32.totalorder %s19, 0
    %p109 = por %p107, %p108
    %s111 = sadd.s32 %s110, 1
    %p114 = scmp.eq.s32.totalorder %s13, 1
    %p115 = scmp.ne.s32.totalorder %s110, %s112
    %p116 = scmp.eq.s32.totalorder %s13, 0
    %p117 = por %p115, %p116
    %p118 = scmp.ne.s32.totalorder %s110, %s112
    %p119 = scmp.eq.s32.totalorder %s18, 1
    %p120 = por %p118, %p119
    %p121 = scmp.ne.s32.totalorder %s112, %s113
    %p122 = scmp.eq.s32.totalorder %s18, 0
    %p123 = por %p121, %p122
    %p124 = scmp.ne.s32.totalorder %s112, %s113
    %p125 = scmp.eq.s32.totalorder %s19, 1
    %p126 = por %p124, %p125
    %p128 = scmp.ne.s32.totalorder %s113, %s127
    %p129 = scmp.eq.s32.totalorder %s19, 0
    %p130 = por %p128, %p129
    %s132 = sadd.s32 %s131, 1
    %p135 = scmp.eq.s32.totalorder %s13, 1
    %p136 = scmp.ne.s32.totalorder %s131, %s133
    %p137 = scmp.eq.s32.totalorder %s13, 0
    %p138 = por %p136, %p137
    %p139 = scmp.ne.s32.totalorder %s131, %s133
    %p140 = scmp.eq.s32.totalorder %s18, 1
    %p141 = por %p139, %p140
    %p142 = scmp.ne.s32.totalorder %s133, %s134
    %p143 = scmp.eq.s32.totalorder %s18, 0
    %p144 = por %p142, %p143
    %p145 = scmp.ne.s32.totalorder %s133, %s134
    %p146 = scmp.eq.s32.totalorder %s19, 1
    %p147 = por %p145, %p146
    %p149 = scmp.ne.s32.totalorder %s134, %s148
    %p150 = scmp.eq.s32.totalorder %s19, 0
    %p151 = por %p149, %p150
    %s153 = sadd.s32 %s152, 1
    %p156 = scmp.eq.s32.totalorder %s13, 1
    %p157 = scmp.ne.s32.totalorder %s152, %s154
    %p158 = scmp.eq.s32.totalorder %s13, 0
    %p159 = por %p157, %p158
    %p160 = scmp.ne.s32.totalorder %s152, %s154
    %p161 = scmp.eq.s32.totalorder %s18, 1
    %p162 = por %p160, %p161
    %p163 = scmp.ne.s32.totalorder %s154, %s155
    %p164 = scmp.eq.s32.totalorder %s18, 0
    %p165 = por %p163, %p164
    %p166 = scmp.ne.s32.totalorder %s154, %s155
    %p167 = scmp.eq.s32.totalorder %s19, 1
    %p168 = por %p166, %p167
    %p170 = scmp.ne.s32.totalorder %s155, %s169
    %p171 = scmp.eq.s32.totalorder %s19, 0
    %p172 = por %p170, %p171
    %s173 = ssub.s32 %s13, %s20
    %p174 = scmp.eq.s32.totalorder %s173, 0
    %s176 = sadd.s32 %s175, 1
    %s177 = scalar_select %p174, %s175, %s176
    %p180 = pneg %p174
    %p181 = scmp.eq.s32.totalorder %s13, 1
    %p182 = por %p180, %p181
    %p183 = scmp.ne.s32.totalorder %s175, %s178
    %p184 = scmp.eq.s32.totalorder %s13, 0
    %p185 = por %p183, %p184
    %p186 = scmp.ne.s32.totalorder %s175, %s178
    %p187 = scmp.eq.s32.totalorder %s18, 1
    %p188 = por %p186, %p187
    %p189 = scmp.ne.s32.totalorder %s178, %s179
    %p190 = scmp.eq.s32.totalorder %s18, 0
    %p191 = por %p189, %p190
    %p192 = scmp.ne.s32.totalorder %s178, %s179
    %p193 = scmp.eq.s32.totalorder %s19, 1
    %p194 = por %p192, %p193
    %p196 = scmp.ne.s32.totalorder %s179, %s195
    %p197 = scmp.eq.s32.totalorder %s19, 0
    %p198 = por %p196, %p197
    %p199 = scmp.le.s32.totalorder 1, %s13
    %p200 = scmp.lt.s32.totalorder %s13, 3
    %p201 = pnand %p199, %p200
    %p202 = pneg %p201
    // Predicated region
    $region9: #{self_attention_pallas.1} parent=5 // pred_check
      _
    $region10: #{self_attention_pallas.1} parent=5 // pred_check_branch
      %204 = sbr.rel (%p201) target = $region12
    $region11: #{self_attention_pallas.1} parent=5 // pred_region
      %s205 = ssub.s32 %s13, 1
      // Predicated region
      $region13: #{self_attention_pallas.1} parent=11 // pred_check
        %p206 = pneg %p60
      $region14: #{self_attention_pallas.1} parent=11 // pred_check_branch
        %208 = sbr.rel (%p206) target = $region16
      $region15: #{self_attention_pallas.1} parent=11 // pred_region
        _
      $region16: #{self_attention_pallas.1} parent=11 // pred_fallthru
        _
      // Predicated region
      $region17: #{self_attention_pallas.1} parent=11 // pred_check
        %p209 = pneg %p81
      $region18: #{self_attention_pallas.1} parent=11 // pred_check_branch
        %211 = sbr.rel (%p209) target = $region20
      $region19: #{self_attention_pallas.1} parent=11 // pred_region
        _
      $region20: #{self_attention_pallas.1} parent=11 // pred_fallthru
        _
      // Predicated region
      $region21: #{self_attention_pallas.1} parent=11 // pred_check
        %p212 = pneg %p102
      $region22: #{self_attention_pallas.1} parent=11 // pred_check_branch
        %214 = sbr.rel (%p212) target = $region24
      $region23: #{self_attention_pallas.1} parent=11 // pred_region
        _
      $region24: #{self_attention_pallas.1} parent=11 // pred_fallthru
        _
      // Predicated region
      $region25: #{self_attention_pallas.1} parent=11 // pred_check
        %p215 = pneg %p123
      $region26: #{self_attention_pallas.1} parent=11 // pred_check_branch
        %217 = sbr.rel (%p215) target = $region28
      $region27: #{self_attention_pallas.1} parent=11 // pred_region
        _
      $region28: #{self_attention_pallas.1} parent=11 // pred_fallthru
        _
      // Predicated region
      $region29: #{self_attention_pallas.1} parent=11 // pred_check
        %p218 = pneg %p144
      $region30: #{self_attention_pallas.1} parent=11 // pred_check_branch
        %220 = sbr.rel (%p218) target = $region32
      $region31: #{self_attention_pallas.1} parent=11 // pred_region
        _
      $region32: #{self_attention_pallas.1} parent=11 // pred_fallthru
        _
      // Predicated region
      $region33: #{self_attention_pallas.1} parent=11 // pred_check
        %p221 = pneg %p165
      $region34: #{self_attention_pallas.1} parent=11 // pred_check_branch
        %223 = sbr.rel (%p221) target = $region36
      $region35: #{self_attention_pallas.1} parent=11 // pred_region
        _
      $region36: #{self_attention_pallas.1} parent=11 // pred_fallthru
        _
    $region12: #{self_attention_pallas.1} parent=5 // pred_fallthru
      _
    %p224 = scmp.lt.s32.totalorder %s13, 2
    // Predicated region
    $region37: #{self_attention_pallas.1} parent=5 // pred_check
      %p225 = pneg %p224
    $region38: #{self_attention_pallas.1} parent=5 // pred_check_branch
      %227 = sbr.rel (%p225) target = $region40
    $region39: #{self_attention_pallas.1} parent=5 // pred_region
      // Predicated region
      $region41: #{self_attention_pallas.1} parent=39 // pred_check
        %p228 = pneg %p33
      $region42: #{self_attention_pallas.1} parent=39 // pred_check_branch
        %230 = sbr.rel (%p228) target = $region44
      $region43: #{self_attention_pallas.1} parent=39 // pred_region
        %p231 = scmp.lt.s32.totalorder %s13, 1
        %s232 = scalar_select %p231, %s13, 1
        %s233 = smul.addr %s232, 8
        %s234 = smul.addr %s233, 4
        %s235 = scalar_lea.vmem %s0, %s234
      $region44: #{self_attention_pallas.1} parent=39 // pred_fallthru
        _
    $region40: #{self_attention_pallas.1} parent=5 // pred_fallthru
      _
    %p236 = scmp.le.s32.totalorder 1, %s13
    %p237 = scmp.lt.s32.totalorder %s13, 3
    %p238 = pnand %p236, %p237
    %p239 = pneg %p238
    // Predicated region
    $region45: #{self_attention_pallas.1} parent=5 // pred_check
      _
    $region46: #{self_attention_pallas.1} parent=5 // pred_check_branch
      %241 = sbr.rel (%p238) target = $region48
    $region47: #{self_attention_pallas.1} parent=5 // pred_region
      %s242 = ssub.s32 %s13, 1
      %p243 = scmp.lt.s32.totalorder %s18, 1
      %s244 = scalar_select %p243, %s18, 1
      %s245 = smul.addr %s244, 8
      %s246 = smul.addr %s245, 4
      %s247 = scalar_lea.vmem %s0, %s246
      %p248 = pneg %p39
      %p249 = pneg %p36
      %p250 = pneg %p60
      %p251 = pneg %p57
      %p252 = pneg %p81
      %p253 = pneg %p78
      %p254 = pneg %p102
      %p255 = pneg %p99
      %p256 = pneg %p123
      %p257 = pneg %p120
      %p258 = pneg %p144
      %p259 = pneg %p141
      %p260 = pneg %p165
      %p261 = pneg %p162
      %p262 = pneg %p191
      %p263 = pneg %p188
      %p264 = scmp.lt.s32.totalorder %s18, 1
      %s265 = scalar_select %p264, %s18, 1
      %s266 = smul.addr %s265, 8
      %s267 = smul.addr %s266, 4
      %s268 = scalar_lea.vmem %s7, %s267
      %p269 = scmp.lt.s32.totalorder %s18, 1
      %s270 = scalar_select %p269, %s18, 1
      %s271 = smul.addr %s270, 8
      %s272 = smul.addr %s271, 4
      %s273 = scalar_lea.vmem %s0, %s272
      %p274 = scmp.lt.s32.totalorder %s18, 1
      %s275 = scalar_select %p274, %s18, 1
      %s276 = smul.addr %s275, 8
      %s277 = smul.addr %s276, 4
      %s278 = scalar_lea.vmem %s7, %s277
      %v280 = vld [vmem:[%s273] sm:$0xff]
      %v281 = vld [vmem:[%s273 + $0x8] sm:$0xff]
      %v282 = vld [vmem:[%s273 + $0x10] sm:$0xff]
      %v283 = vld [vmem:[%s273 + $0x18] sm:$0xff]
      %v284 = vunpack.c.l.bf16 %v280
      %v285 = vunpack.c.h.bf16 %v280
      %v286 = vunpack.c.l.bf16 %v281
      %v287 = vunpack.c.h.bf16 %v281
      %v288 = vunpack.c.l.bf16 %v282
      %v289 = vunpack.c.h.bf16 %v282
      %v290 = vunpack.c.l.bf16 %v283
      %v291 = vunpack.c.h.bf16 %v283
      %v292 = vld [vmem:[%s1] sm:$0xff]
      %v293 = vld [vmem:[%s1 + $0x8] sm:$0xff]
      %v294 = vld [vmem:[%s1 + $0x10] sm:$0xff]
      %v295 = vld [vmem:[%s1 + $0x18] sm:$0xff]
      %v296 = vadd.f32 %v284, %v285
      %297 = vadd.xlane.f32.xlu0 %v296
      %v298 = vpop.xlane.xlu0 %297
      %v299 = vadd.f32 %v286, %v287
      %300 = vadd.xlane.f32.xlu0 %v299
      %v301 = vpop.xlane.xlu0 %300
      %v302 = vadd.f32 %v288, %v289
      %303 = vadd.xlane.f32.xlu0 %v302
      %v304 = vpop.xlane.xlu0 %303
      %v305 = vadd.f32 %v290, %v291
      %306 = vadd.xlane.f32.xlu0 %v305
      %v307 = vpop.xlane.xlu0 %306
      %v312 = vlaneseq
      %v313 = vand.u32 %v312, 127
      %v314 = vlaneseq
      %v315 = vshrl.u32 %v314, 7
      %v316 = vsub.s32 %v313, %v315
      %v317 = vrot.slane %v298, %v316
      %v318 = vadd.s32 %v313, 4294967288
      %v319 = vlaneseq
      %v320 = vshrl.u32 %v319, 7
      %v321 = vsub.s32 %v318, %v320
      %v322 = vrot.slane %v301, %v321
      %vm323 = vcmask 130112
      %v324 = vsel %vm323, %v322, %v317
      %v325 = vadd.s32 %v313, 4294967280
      %v326 = vlaneseq
      %v327 = vshrl.u32 %v326, 7
      %v328 = vsub.s32 %v325, %v327
      %v329 = vrot.slane %v304, %v328
      %vm330 = vcmask 195712
      %v331 = vsel %vm330, %v329, %v324
      %v332 = vadd.s32 %v313, 4294967272
      %v333 = vlaneseq
      %v334 = vshrl.u32 %v333, 7
      %v335 = vsub.s32 %v332, %v334
      %v336 = vrot.slane %v307, %v335
      %vm337 = vcmask 261312
      %v338 = vsel %vm337, %v336, %v331
      %vm339 = vcmask 261120
      %v340 = vsel %vm339, %v338, 0
      %342 = vmatprep.subr.mxu0 0.0
      %343 = vmatpush1.msra.mxu0 %v292
      %344 = vmatprep.subr.mxu0 0.0
      %345 = vmatpush1.msra.mxu0 %v293
      %346 = vmatprep.subr.mxu0 0.0
      %347 = vmatpush1.msra.mxu0 %v294
      %348 = vmatprep.subr.mxu0 0.0
      %349 = vmatpush1.msra.mxu0 %v295
      %350 = vmatprep.subr.mxu0 0.0
      %351 = vmatpush1.msra.mxu0 0.0
      %352 = vmatprep.subr.mxu0 0.0
      %353 = vmatpush1.msra.mxu0 0.0
      %354 = vmatprep.subr.mxu0 0.0
      %355 = vmatpush1.msra.mxu0 0.0
      %356 = vmatprep.subr.mxu0 0.0
      %357 = vmatpush1.msra.mxu0 0.0
      %358 = vmatprep.subr.mxu0 0.0
      %359 = vmatpush1.msra.mxu0 0.0
      %360 = vmatprep.subr.mxu0 0.0
      %361 = vmatpush1.msra.mxu0 0.0
      %362 = vmatprep.subr.mxu0 0.0
      %363 = vmatpush1.msra.mxu0 0.0
      %364 = vmatprep.subr.mxu0 0.0
      %365 = vmatpush1.msra.mxu0 0.0
      %366 = vmatprep.subr.mxu0 0.0
      %367 = vmatpush1.msra.mxu0 0.0
      %368 = vmatprep.subr.mxu0 0.0
      %369 = vmatpush1.msra.mxu0 0.0
      %370 = vmatprep.subr.mxu0 0.0
      %371 = vmatpush1.msra.mxu0 0.0
      %372 = vmatprep.subr.mxu0 0.0
      %373 = vmatpush1.msra.mxu0 0.0
      %374 = vmatprep.subr.mxu0 0.0
      %375 = vmatpush1.msra.mxu0 0.0
      %376 = vmatprep.subr.mxu0 0.0
      %377 = vmatpush1.msra.mxu0 0.0
      %378 = vmatprep.subr.mxu0 0.0
      %379 = vmatpush1.msra.mxu0 0.0
      %380 = vmatprep.subr.mxu0 0.0
      %381 = vmatpush1.msra.mxu0 0.0
      %382 = vmatprep.subr.mxu0 0.0
      %383 = vmatpush1.msra.mxu0 0.0
      %384 = vmatprep.subr.mxu0 0.0
      %385 = vmatpush1.msra.mxu0 0.0
      %386 = vmatprep.subr.mxu0 0.0
      %387 = vmatpush1.msra.mxu0 0.0
      %388 = vmatprep.subr.mxu0 0.0
      %389 = vmatpush1.msra.mxu0 0.0
      %390 = vmatprep.subr.mxu0 0.0
      %391 = vmatpush1.msra.mxu0 0.0
      %392 = vmatprep.subr.mxu0 0.0
      %393 = vmatpush1.msra.mxu0 0.0
      %394 = vmatprep.subr.mxu0 0.0
      %395 = vmatpush1.msra.mxu0 0.0
      %396 = vmatprep.subr.mxu0 0.0
      %397 = vmatpush1.msra.mxu0 0.0
      %398 = vmatprep.subr.mxu0 0.0
      %399 = vmatpush1.msra.mxu0 0.0
      %400 = vmatprep.subr.mxu0 0.0
      %401 = vmatpush1.msra.mxu0 0.0
      %402 = vmatprep.subr.mxu0 0.0
      %403 = vmatpush1.msra.mxu0 0.0
      %404 = vmatprep.subr.mxu0 0.0
      %405 = vmatpush1.msra.mxu0 0.0
      %406 = vmatprep.mubr.f32.mxu0 0.0
      %407 = vmatmul.mubr.f32.gmra.mrb[0].mxu0 %v340
      %v408 = vpop.f32.mrb[0].mxu0
      %v409 = vadd.f32 0.0, %v408
      %v410 = vpop.f32.mrb[0].mxu0
      %411 = vdwg.mxu0
      %v412 = vmul.f32 %v409, 0.0009765625
      %vm413 = vcmask 64512
      %v415 = vsel %vm413, %v412, 0
      %v418 = vsel %vm413, %v292, 0
      %v421 = vsel %vm413, %v293, 0
      %v424 = vsel %vm413, %v294, 0
      %v427 = vsel %vm413, %v295, 0
      %429 = vmatprep.subr.mxu0 0.0
      %430 = vmatpush1.xpose.msra.mxu0 %v418
      %431 = vmatprep.subr.mxu0 0.0
      %432 = vmatpush1.xpose.msra.mxu0 %v421
      %433 = vmatprep.subr.mxu0 0.0
      %434 = vmatpush1.xpose.msra.mxu0 %v424
      %435 = vmatprep.subr.mxu0 0.0
      %436 = vmatpush1.xpose.msra.mxu0 %v427
      %437 = vmatprep.subr.mxu0 0.0
      %438 = vmatpush1.xpose.msra.mxu0 0.0
      %439 = vmatprep.subr.mxu0 0.0
      %440 = vmatpush1.xpose.msra.mxu0 0.0
      %441 = vmatprep.subr.mxu0 0.0
      %442 = vmatpush1.xpose.msra.mxu0 0.0
      %443 = vmatprep.subr.mxu0 0.0
      %444 = vmatpush1.xpose.msra.mxu0 0.0
      %445 = vmatprep.subr.mxu0 0.0
      %446 = vmatpush1.xpose.msra.mxu0 0.0
      %447 = vmatprep.subr.mxu0 0.0
      %448 = vmatpush1.xpose.msra.mxu0 0.0
      %449 = vmatprep.subr.mxu0 0.0
      %450 = vmatpush1.xpose.msra.mxu0 0.0
      %451 = vmatprep.subr.mxu0 0.0
      %452 = vmatpush1.xpose.msra.mxu0 0.0
      %453 = vmatprep.subr.mxu0 0.0
      %454 = vmatpush1.xpose.msra.mxu0 0.0
      %455 = vmatprep.subr.mxu0 0.0
      %456 = vmatpush1.xpose.msra.mxu0 0.0
      %457 = vmatprep.subr.mxu0 0.0
      %458 = vmatpush1.xpose.msra.mxu0 0.0
      %459 = vmatprep.subr.mxu0 0.0
      %460 = vmatpush1.xpose.msra.mxu0 0.0
      %461 = vmatprep.subr.mxu0 0.0
      %462 = vmatpush1.xpose.msra.mxu0 0.0
      %463 = vmatprep.subr.mxu0 0.0
      %464 = vmatpush1.xpose.msra.mxu0 0.0
      %465 = vmatprep.subr.mxu0 0.0
      %466 = vmatpush1.xpose.msra.mxu0 0.0
      %467 = vmatprep.subr.mxu0 0.0
      %468 = vmatpush1.xpose.msra.mxu0 0.0
      %469 = vmatprep.subr.mxu0 0.0
      %470 = vmatpush1.xpose.msra.mxu0 0.0
      %471 = vmatprep.subr.mxu0 0.0
      %472 = vmatpush1.xpose.msra.mxu0 0.0
      %473 = vmatprep.subr.mxu0 0.0
      %474 = vmatpush1.xpose.msra.mxu0 0.0
      %475 = vmatprep.subr.mxu0 0.0
      %476 = vmatpush1.xpose.msra.mxu0 0.0
      %477 = vmatprep.subr.mxu0 0.0
      %478 = vmatpush1.xpose.msra.mxu0 0.0
      %479 = vmatprep.subr.mxu0 0.0
      %480 = vmatpush1.xpose.msra.mxu0 0.0
      %481 = vmatprep.subr.mxu0 0.0
      %482 = vmatpush1.xpose.msra.mxu0 0.0
      %483 = vmatprep.subr.mxu0 0.0
      %484 = vmatpush1.xpose.msra.mxu0 0.0
      %485 = vmatprep.subr.mxu0 0.0
      %486 = vmatpush1.xpose.msra.mxu0 0.0
      %487 = vmatprep.subr.mxu0 0.0
      %488 = vmatpush1.xpose.msra.mxu0 0.0
      %489 = vmatprep.subr.mxu0 0.0
      %490 = vmatpush1.xpose.msra.mxu0 0.0
      %491 = vmatprep.subr.mxu0 0.0
      %492 = vmatpush1.xpose.msra.mxu0 0.0
      %493 = vmatprep.mubr.f32.mxu0 0.0
      %494 = vmatmul.mubr.f32.gmra.mrb[0].mxu0 %v415
      %v495 = vpop.f32.mrb[0].mxu0
      %v496 = vadd.f32 0.0, %v495
      %v497 = vpop.f32.mrb[0].mxu0
      %498 = vdwg.mxu0
      %v499 = vlaneseq
      %v500 = vshrl.u32 %v499, 7
      %v501 = vsub.s32 0, %v500
      %v502 = vrot.slane %v496, %v501
      %504 = vbcast.lane.b32.xlu0 %v502, 256
      %v505 = vpop.permute.xlu0 %504
      %s507 = sor.u32 256, 8
      %508 = vbcast.lane.b32.xlu0 %v502, %s507
      %v509 = vpop.permute.xlu0 %508
      %s511 = sor.u32 256, 16
      %512 = vbcast.lane.b32.xlu0 %v502, %s511
      %v513 = vpop.permute.xlu0 %512
      %s515 = sor.u32 256, 24
      %516 = vbcast.lane.b32.xlu0 %v502, %s515
      %v517 = vpop.permute.xlu0 %516
      %v518 = vsub.f32 %v284, %v505
      %v519 = vsub.f32 %v285, %v505
      %v520 = vsub.f32 %v286, %v509
      %v521 = vsub.f32 %v287, %v509
      %v522 = vsub.f32 %v288, %v513
      %v523 = vsub.f32 %v289, %v513
      %v524 = vsub.f32 %v290, %v517
      %v525 = vsub.f32 %v291, %v517
      %v526 = vmul.f32 %v518, %v518
      %v527 = vmul.f32 %v519, %v519
      %v528 = vmul.f32 %v520, %v520
      %v529 = vmul.f32 %v521, %v521
      %v530 = vmul.f32 %v522, %v522
      %v531 = vmul.f32 %v523, %v523
      %v532 = vmul.f32 %v524, %v524
      %v533 = vmul.f32 %v525, %v525
      %v534 = vadd.f32 %v526, %v527
      %535 = vadd.xlane.f32.xlu0 %v534
      %v536 = vpop.xlane.xlu0 %535
      %v537 = vadd.f32 %v528, %v529
      %538 = vadd.xlane.f32.xlu0 %v537
      %v539 = vpop.xlane.xlu0 %538
      %v540 = vadd.f32 %v530, %v531
      %541 = vadd.xlane.f32.xlu0 %v540
      %v542 = vpop.xlane.xlu0 %541
      %v543 = vadd.f32 %v532, %v533
      %544 = vadd.xlane.f32.xlu0 %v543
      %v545 = vpop.xlane.xlu0 %544
      %v550 = vlaneseq
      %v551 = vshrl.u32 %v550, 7
      %v552 = vsub.s32 %v313, %v551
      %v553 = vrot.slane %v536, %v552
      %v554 = vlaneseq
      %v555 = vshrl.u32 %v554, 7
      %v556 = vsub.s32 %v318, %v555
      %v557 = vrot.slane %v539, %v556
      %v558 = vsel %vm323, %v557, %v553
      %v559 = vlaneseq
      %v560 = vshrl.u32 %v559, 7
      %v561 = vsub.s32 %v325, %v560
      %v562 = vrot.slane %v542, %v561
      %v563 = vsel %vm330, %v562, %v558
      %v564 = vlaneseq
      %v565 = vshrl.u32 %v564, 7
      %v566 = vsub.s32 %v332, %v565
      %v567 = vrot.slane %v545, %v566
      %v568 = vsel %vm337, %v567, %v563
      %v569 = vsel %vm339, %v568, 0
      %571 = vmatprep.subr.mxu0 0.0
      %572 = vmatpush1.msra.mxu0 %v292
      %573 = vmatprep.subr.mxu0 0.0
      %574 = vmatpush1.msra.mxu0 %v293
      %575 = vmatprep.subr.mxu0 0.0
      %576 = vmatpush1.msra.mxu0 %v294
      %577 = vmatprep.subr.mxu0 0.0
      %578 = vmatpush1.msra.mxu0 %v295
      %579 = vmatprep.subr.mxu0 0.0
      %580 = vmatpush1.msra.mxu0 0.0
      %581 = vmatprep.subr.mxu0 0.0
      %582 = vmatpush1.msra.mxu0 0.0
      %583 = vmatprep.subr.mxu0 0.0
      %584 = vmatpush1.msra.mxu0 0.0
      %585 = vmatprep.subr.mxu0 0.0
      %586 = vmatpush1.msra.mxu0 0.0
      %587 = vmatprep.subr.mxu0 0.0
      %588 = vmatpush1.msra.mxu0 0.0
      %589 = vmatprep.subr.mxu0 0.0
      %590 = vmatpush1.msra.mxu0 0.0
      %591 = vmatprep.subr.mxu0 0.0
      %592 = vmatpush1.msra.mxu0 0.0
      %593 = vmatprep.subr.mxu0 0.0
      %594 = vmatpush1.msra.mxu0 0.0
      %595 = vmatprep.subr.mxu0 0.0
      %596 = vmatpush1.msra.mxu0 0.0
      %597 = vmatprep.subr.mxu0 0.0
      %598 = vmatpush1.msra.mxu0 0.0
      %599 = vmatprep.subr.mxu0 0.0
      %600 = vmatpush1.msra.mxu0 0.0
      %601 = vmatprep.subr.mxu0 0.0
      %602 = vmatpush1.msra.mxu0 0.0
      %603 = vmatprep.subr.mxu0 0.0
      %604 = vmatpush1.msra.mxu0 0.0
      %605 = vmatprep.subr.mxu0 0.0
      %606 = vmatpush1.msra.mxu0 0.0
      %607 = vmatprep.subr.mxu0 0.0
      %608 = vmatpush1.msra.mxu0 0.0
      %609 = vmatprep.subr.mxu0 0.0
      %610 = vmatpush1.msra.mxu0 0.0
      %611 = vmatprep.subr.mxu0 0.0
      %612 = vmatpush1.msra.mxu0 0.0
      %613 = vmatprep.subr.mxu0 0.0
      %614 = vmatpush1.msra.mxu0 0.0
      %615 = vmatprep.subr.mxu0 0.0
      %616 = vmatpush1.msra.mxu0 0.0
      %617 = vmatprep.subr.mxu0 0.0
      %618 = vmatpush1.msra.mxu0 0.0
      %619 = vmatprep.subr.mxu0 0.0
      %620 = vmatpush1.msra.mxu0 0.0
      %621 = vmatprep.subr.mxu0 0.0
      %622 = vmatpush1.msra.mxu0 0.0
      %623 = vmatprep.subr.mxu0 0.0
      %624 = vmatpush1.msra.mxu0 0.0
      %625 = vmatprep.subr.mxu0 0.0
      %626 = vmatpush1.msra.mxu0 0.0
      %627 = vmatprep.subr.mxu0 0.0
      %628 = vmatpush1.msra.mxu0 0.0
      %629 = vmatprep.subr.mxu0 0.0
      %630 = vmatpush1.msra.mxu0 0.0
      %631 = vmatprep.subr.mxu0 0.0
      %632 = vmatpush1.msra.mxu0 0.0
      %633 = vmatprep.subr.mxu0 0.0
      %634 = vmatpush1.msra.mxu0 0.0
      %635 = vmatprep.mubr.f32.mxu0 0.0
      %636 = vmatmul.mubr.f32.gmra.mrb[0].mxu0 %v569
      %v637 = vpop.f32.mrb[0].mxu0
      %v638 = vadd.f32 0.0, %v637
      %v639 = vpop.f32.mrb[0].mxu0
      %640 = vdwg.mxu0
      %v641 = vmul.f32 %v638, 0.0009765625
      %v643 = vsel %vm413, %v641, 0
      %645 = vmatprep.subr.mxu0 0.0
      %646 = vmatpush1.xpose.msra.mxu0 %v418
      %647 = vmatprep.subr.mxu0 0.0
      %648 = vmatpush1.xpose.msra.mxu0 %v421
      %649 = vmatprep.subr.mxu0 0.0
      %650 = vmatpush1.xpose.msra.mxu0 %v424
      %651 = vmatprep.subr.mxu0 0.0
      %652 = vmatpush1.xpose.msra.mxu0 %v427
      %653 = vmatprep.subr.mxu0 0.0
      %654 = vmatpush1.xpose.msra.mxu0 0.0
      %655 = vmatprep.subr.mxu0 0.0
      %656 = vmatpush1.xpose.msra.mxu0 0.0
      %657 = vmatprep.subr.mxu0 0.0
      %658 = vmatpush1.xpose.msra.mxu0 0.0
      %659 = vmatprep.subr.mxu0 0.0
      %660 = vmatpush1.xpose.msra.mxu0 0.0
      %661 = vmatprep.subr.mxu0 0.0
      %662 = vmatpush1.xpose.msra.mxu0 0.0
      %663 = vmatprep.subr.mxu0 0.0
      %664 = vmatpush1.xpose.msra.mxu0 0.0
      %665 = vmatprep.subr.mxu0 0.0
      %666 = vmatpush1.xpose.msra.mxu0 0.0
      %667 = vmatprep.subr.mxu0 0.0
      %668 = vmatpush1.xpose.msra.mxu0 0.0
      %669 = vmatprep.subr.mxu0 0.0
      %670 = vmatpush1.xpose.msra.mxu0 0.0
      %671 = vmatprep.subr.mxu0 0.0
      %672 = vmatpush1.xpose.msra.mxu0 0.0
      %673 = vmatprep.subr.mxu0 0.0
      %674 = vmatpush1.xpose.msra.mxu0 0.0
      %675 = vmatprep.subr.mxu0 0.0
      %676 = vmatpush1.xpose.msra.mxu0 0.0
      %677 = vmatprep.subr.mxu0 0.0
      %678 = vmatpush1.xpose.msra.mxu0 0.0
      %679 = vmatprep.subr.mxu0 0.0
      %680 = vmatpush1.xpose.msra.mxu0 0.0
      %681 = vmatprep.subr.mxu0 0.0
      %682 = vmatpush1.xpose.msra.mxu0 0.0
      %683 = vmatprep.subr.mxu0 0.0
      %684 = vmatpush1.xpose.msra.mxu0 0.0
      %685 = vmatprep.subr.mxu0 0.0
      %686 = vmatpush1.xpose.msra.mxu0 0.0
      %687 = vmatprep.subr.mxu0 0.0
      %688 = vmatpush1.xpose.msra.mxu0 0.0
      %689 = vmatprep.subr.mxu0 0.0
      %690 = vmatpush1.xpose.msra.mxu0 0.0
      %691 = vmatprep.subr.mxu0 0.0
      %692 = vmatpush1.xpose.msra.mxu0 0.0
      %693 = vmatprep.subr.mxu0 0.0
      %694 = vmatpush1.xpose.msra.mxu0 0.0
      %695 = vmatprep.subr.mxu0 0.0
      %696 = vmatpush1.xpose.msra.mxu0 0.0
      %697 = vmatprep.subr.mxu0 0.0
      %698 = vmatpush1.xpose.msra.mxu0 0.0
      %699 = vmatprep.subr.mxu0 0.0
      %700 = vmatpush1.xpose.msra.mxu0 0.0
      %701 = vmatprep.subr.mxu0 0.0
      %702 = vmatpush1.xpose.msra.mxu0 0.0
      %703 = vmatprep.subr.mxu0 0.0
      %704 = vmatpush1.xpose.msra.mxu0 0.0
      %705 = vmatprep.subr.mxu0 0.0
      %706 = vmatpush1.xpose.msra.mxu0 0.0
      %707 = vmatprep.subr.mxu0 0.0
      %708 = vmatpush1.xpose.msra.mxu0 0.0
      %709 = vmatprep.mubr.f32.mxu0 0.0
      %710 = vmatmul.mubr.f32.gmra.mrb[0].mxu0 %v643
      %v711 = vpop.f32.mrb[0].mxu0
      %v712 = vadd.f32 0.0, %v711
      %v713 = vpop.f32.mrb[0].mxu0
      %714 = vdwg.mxu0
      %v715 = vlaneseq
      %v716 = vshrl.u32 %v715, 7
      %v717 = vsub.s32 0, %v716
      %v718 = vrot.slane %v712, %v717
      %720 = vbcast.lane.b32.xlu0 %v718, 256
      %v721 = vpop.permute.xlu0 %720
      %s723 = sor.u32 256, 8
      %724 = vbcast.lane.b32.xlu0 %v718, %s723
      %v725 = vpop.permute.xlu0 %724
      %s727 = sor.u32 256, 16
      %728 = vbcast.lane.b32.xlu0 %v718, %s727
      %v729 = vpop.permute.xlu0 %728
      %s731 = sor.u32 256, 24
      %732 = vbcast.lane.b32.xlu0 %v718, %s731
      %v733 = vpop.permute.xlu0 %732
      %v734 = vadd.f32 %v721, 1e-05
      %v735 = vadd.f32 %v725, 1e-05
      %v736 = vadd.f32 %v729, 1e-05
      %v737 = vadd.f32 %v733, 1e-05
      %v738 = vrsqrt.pop %v734
      %v739 = vrsqrt.pop %v735
      %v740 = vrsqrt.pop %v736
      %v741 = vrsqrt.pop %v737
      %v742 = vmul.f32 %v518, %v738
      %v743 = vmul.f32 %v519, %v738
      %v744 = vmul.f32 %v520, %v739
      %v745 = vmul.f32 %v521, %v739
      %v746 = vmul.f32 %v522, %v740
      %v747 = vmul.f32 %v523, %v740
      %v748 = vmul.f32 %v524, %v741
      %v749 = vmul.f32 %v525, %v741
      %v750 = vld [vmem:[%s2] sm:$0xff]
      %v751 = vld [vmem:[%s2 + $0x8] sm:$0xff]
      %v752 = vld [vmem:[%s2 + $0x10] sm:$0xff]
      %v753 = vld [vmem:[%s2 + $0x18] sm:$0xff]
      %755 = vset.pattern.permute.xlu0 0
      %756 = vperm.xlu0 %755, %v750
      %v757 = vpop.permute.xlu0 %756
      %760 = vset.pattern.permute.xlu0 0
      %761 = vperm.xlu0 %760, %v751
      %v762 = vpop.permute.xlu0 %761
      %765 = vset.pattern.permute.xlu0 0
      %766 = vperm.xlu0 %765, %v752
      %v767 = vpop.permute.xlu0 %766
      %770 = vset.pattern.permute.xlu0 0
      %771 = vperm.xlu0 %770, %v753
      %v772 = vpop.permute.xlu0 %771
      %v774 = vmul.f32 %v742, %v757
      %v775 = vmul.f32 %v743, %v757
      %v776 = vmul.f32 %v744, %v762
      %v777 = vmul.f32 %v745, %v762
      %v778 = vmul.f32 %v746, %v767
      %v779 = vmul.f32 %v747, %v767
      %v780 = vmul.f32 %v748, %v772
      %v781 = vmul.f32 %v749, %v772
      %v782 = vld [vmem:[%s3] sm:$0xff]
      %v783 = vld [vmem:[%s3 + $0x8] sm:$0xff]
      %v784 = vld [vmem:[%s3 + $0x10] sm:$0xff]
      %v785 = vld [vmem:[%s3 + $0x18] sm:$0xff]
      %787 = vset.pattern.permute.xlu0 0
      %788 = vperm.xlu0 %787, %v782
      %v789 = vpop.permute.xlu0 %788
      %792 = vset.pattern.permute.xlu0 0
      %793 = vperm.xlu0 %792, %v783
      %v794 = vpop.permute.xlu0 %793
      %797 = vset.pattern.permute.xlu0 0
      %798 = vperm.xlu0 %797, %v784
      %v799 = vpop.permute.xlu0 %798
      %802 = vset.pattern.permute.xlu0 0
      %803 = vperm.xlu0 %802, %v785
      %v804 = vpop.permute.xlu0 %803
      %v806 = vadd.f32 %v774, %v789
      %v807 = vadd.f32 %v775, %v789
      %v808 = vadd.f32 %v776, %v794
      %v809 = vadd.f32 %v777, %v794
      %v810 = vadd.f32 %v778, %v799
      %v811 = vadd.f32 %v779, %v799
      %v812 = vadd.f32 %v780, %v804
      %v813 = vadd.f32 %v781, %v804
      %v814 = vld [vmem:[%s4] sm:$0xf]
      %v815 = vld [vmem:[%s4 + $0x4] sm:$0xf]
      %v816 = vld [vmem:[%s4 + $0x8] sm:$0xf]
      %v817 = vld [vmem:[%s4 + $0xc] sm:$0xf]
      %v818 = vld [vmem:[%s4 + $0x10] sm:$0xf]
      %v819 = vld [vmem:[%s4 + $0x14] sm:$0xf]
      %v820 = vld [vmem:[%s4 + $0x18] sm:$0xf]
      %v821 = vld [vmem:[%s4 + $0x1c] sm:$0xf]
      %v822 = vld [vmem:[%s4 + $0x20] sm:$0xf]
      %v823 = vld [vmem:[%s4 + $0x24] sm:$0xf]
      %v824 = vld [vmem:[%s4 + $0x28] sm:$0xf]
      %v825 = vld [vmem:[%s4 + $0x2c] sm:$0xf]
      %v826 = vld [vmem:[%s5] sm:$0xf]
      %v827 = vld [vmem:[%s5 + $0x4] sm:$0xf]
      %v828 = vld [vmem:[%s5 + $0x8] sm:$0xf]
      %v829 = vld [vmem:[%s5 + $0xc] sm:$0xf]
      %v830 = vld [vmem:[%s6] sm:$0xff]
      %v831 = vld [vmem:[%s6 + $0x8] sm:$0xff]
      %v832 = vld [vmem:[%s6 + $0x10] sm:$0xff]
      %v833 = vld [vmem:[%s6 + $0x18] sm:$0xff]
      %v834 = vpack.c.bf16 %v808, %v806
      %v835 = vpack.c.bf16 %v809, %v807
      %v836 = vpack.c.bf16 %v812, %v810
      %v837 = vpack.c.bf16 %v813, %v811
      %v850 = vunpack.c.l.b16 %v814
      %v851 = vunpack.c.l.b16 %v815
      %v852 = vunpack.c.l.b16 %v816
      %v853 = vunpack.c.l.b16 %v817
      %v854 = vunpack.c.l.b16 %v818
      %v855 = vunpack.c.l.b16 %v819
      %v856 = vunpack.c.l.b16 %v820
      %v857 = vunpack.c.l.b16 %v821
      %v858 = vunpack.c.l.b16 %v822
      %v859 = vunpack.c.l.b16 %v823
      %v860 = vunpack.c.l.b16 %v824
      %v861 = vunpack.c.l.b16 %v825
      %v862 = vpack.c.b16 %v851, %v850
      %v863 = vpack.c.b16 %v853, %v852
      %v864 = vpack.c.b16 %v855, %v854
      %v865 = vpack.c.b16 %v857, %v856
      %v866 = vpack.c.b16 %v859, %v858
      %v867 = vpack.c.b16 %v861, %v860
      %v869 = vsel %vm339, %v862, 0
      %v872 = vsel %vm339, %v863, 0
      %v875 = vsel %vm339, %v864, 0
      %v878 = vsel %vm339, %v865, 0
      %v881 = vsel %vm339, %v866, 0
      %v884 = vsel %vm339, %v867, 0
      %886 = vmatprep.subr.bf16.mxu0 %v835
      %887 = vmatpush1.bf16.msra.mxu0 %v834
      %888 = vmatprep.subr.bf16.mxu0 %v837
      %889 = vmatpush1.bf16.msra.mxu0 %v836
      %890 = vmatprep.subr.bf16.mxu0 0
      %891 = vmatpush1.bf16.msra.mxu0 0
      %892 = vmatprep.subr.bf16.mxu0 0
      %893 = vmatpush1.bf16.msra.mxu0 0
      %894 = vmatprep.subr.bf16.mxu0 0
      %895 = vmatpush1.bf16.msra.mxu0 0
      %896 = vmatprep.subr.bf16.mxu0 0
      %897 = vmatpush1.bf16.msra.mxu0 0
      %898 = vmatprep.subr.bf16.mxu0 0
      %899 = vmatpush1.bf16.msra.mxu0 0
      %900 = vmatprep.subr.bf16.mxu0 0
      %901 = vmatpush1.bf16.msra.mxu0 0
      %902 = vmatprep.subr.bf16.mxu0 0
      %903 = vmatpush1.bf16.msra.mxu0 0
      %904 = vmatprep.subr.bf16.mxu0 0
      %905 = vmatpush1.bf16.msra.mxu0 0
      %906 = vmatprep.subr.bf16.mxu0 0
      %907 = vmatpush1.bf16.msra.mxu0 0
      %908 = vmatprep.subr.bf16.mxu0 0
      %909 = vmatpush1.bf16.msra.mxu0 0
      %910 = vmatprep.subr.bf16.mxu0 0
      %911 = vmatpush1.bf16.msra.mxu0 0
      %912 = vmatprep.subr.bf16.mxu0 0
      %913 = vmatpush1.bf16.msra.mxu0 0
      %914 = vmatprep.subr.bf16.mxu0 0
      %915 = vmatpush1.bf16.msra.mxu0 0
      %916 = vmatprep.subr.bf16.mxu0 0
      %917 = vmatpush1.bf16.msra.mxu0 0
      %918 = vmatprep.mubr.bf16.mxu0 0
      %919 = vmatmul.mubr.bf16.gmra.mrb[0].mxu0 %v869
      %v920 = vpop.f32.mrb[0].mxu0
      %v921 = vadd.f32 0.0, %v920
      %v922 = vpop.f32.mrb[0].mxu0
      %v923 = vadd.f32 0.0, %v922
      %v924 = vpop.f32.mrb[0].mxu0
      %v925 = vadd.f32 0.0, %v924
      %v926 = vpop.f32.mrb[0].mxu0
      %v927 = vadd.f32 0.0, %v926
      %928 = vmatprep.mubr.bf16.mxu0 0
      %929 = vmatmul.mubr.bf16.gmra.mrb[0].mxu0 %v872
      %v930 = vpop.f32.mrb[0].mxu0
      %v931 = vadd.f32 0.0, %v930
      %v932 = vpop.f32.mrb[0].mxu0
      %v933 = vadd.f32 0.0, %v932
      %v934 = vpop.f32.mrb[0].mxu0
      %v935 = vadd.f32 0.0, %v934
      %v936 = vpop.f32.mrb[0].mxu0
      %v937 = vadd.f32 0.0, %v936
      %938 = vmatprep.mubr.bf16.mxu0 0
      %939 = vmatmul.mubr.bf16.gmra.mrb[0].mxu0 %v875
      %v940 = vpop.f32.mrb[0].mxu0
      %v941 = vadd.f32 0.0, %v940
      %v942 = vpop.f32.mrb[0].mxu0
      %v943 = vadd.f32 0.0, %v942
      %v944 = vpop.f32.mrb[0].mxu0
      %v945 = vadd.f32 0.0, %v944
      %v946 = vpop.f32.mrb[0].mxu0
      %v947 = vadd.f32 0.0, %v946
      %948 = vmatprep.mubr.bf16.mxu0 0
      %949 = vmatmul.mubr.bf16.gmra.mrb[0].mxu0 %v878
      %v950 = vpop.f32.mrb[0].mxu0
      %v951 = vadd.f32 0.0, %v950
      %v952 = vpop.f32.mrb[0].mxu0
      %v953 = vadd.f32 0.0, %v952
      %v954 = vpop.f32.mrb[0].mxu0
      %v955 = vadd.f32 0.0, %v954
      %v956 = vpop.f32.mrb[0].mxu0
      %v957 = vadd.f32 0.0, %v956
      %958 = vmatprep.mubr.bf16.mxu0 0
      %959 = vmatmul.mubr.bf16.gmra.mrb[0].mxu0 %v881
      %v960 = vpop.f32.mrb[0].mxu0
      %v961 = vadd.f32 0.0, %v960
      %v962 = vpop.f32.mrb[0].mxu0
      %v963 = vadd.f32 0.0, %v962
      %v964 = vpop.f32.mrb[0].mxu0
      %v965 = vadd.f32 0.0, %v964
      %v966 = vpop.f32.mrb[0].mxu0
      %v967 = vadd.f32 0.0, %v966
      %968 = vmatprep.mubr.bf16.mxu0 0
      %969 = vmatmul.mubr.bf16.gmra.mrb[0].mxu0 %v884
      %v970 = vpop.f32.mrb[0].mxu0
      %v971 = vadd.f32 0.0, %v970
      %v972 = vpop.f32.mrb[0].mxu0
      %v973 = vadd.f32 0.0, %v972
      %v974 = vpop.f32.mrb[0].mxu0
      %v975 = vadd.f32 0.0, %v974
      %v976 = vpop.f32.mrb[0].mxu0
      %v977 = vadd.f32 0.0, %v976
      %978 = vdwg.mxu0
      %v979 = vpack.c.bf16 %v925, %v921
      %v980 = vpack.c.bf16 %v927, %v923
      %v981 = vpack.c.bf16 %v935, %v931
      %v982 = vpack.c.bf16 %v937, %v933
      %v983 = vpack.c.bf16 %v945, %v941
      %v984 = vpack.c.bf16 %v947, %v943
      %v985 = vpack.c.bf16 %v955, %v951
      %v986 = vpack.c.bf16 %v957, %v953
      %v987 = vpack.c.bf16 %v965, %v961
      %v988 = vpack.c.bf16 %v967, %v963
      %v989 = vpack.c.bf16 %v975, %v971
      %v990 = vpack.c.bf16 %v977, %v973
      %991 = vxpose.xlu0.c.b16.start [1/8] %v983, 128
      %992 = vxpose.xlu0.c.b16.cont [2/8] 0, 128
      %993 = vxpose.xlu0.c.b16.cont [3/8] 0, 128
      %994 = vxpose.xlu0.c.b16.cont [4/8] 0, 128
      %995 = vxpose.xlu0.c.b16.cont [5/8] 0, 128
      %996 = vxpose.xlu0.c.b16.cont [6/8] 0, 128
      %997 = vxpose.xlu0.c.b16.cont [7/8] 0, 128
      %998 = vxpose.xlu0.c.b16.end [8/8] 0, 128
      %v999 = vpop.trf.xlu0
      %v1000 = vpop.trf.xlu0
      %v1001 = vpop.trf.xlu0
      %v1002 = vpop.trf.xlu0
      %v1003 = vpop.trf.xlu0
      %v1004 = vpop.trf.xlu0
      %v1005 = vpop.trf.xlu0
      %v1006 = vpop.trf.xlu0
      %1007 = vxpose.xlu0.c.b16.start [1/8] %v984, 128
      %1008 = vxpose.xlu0.c.b16.cont [2/8] 0, 128
      %1009 = vxpose.xlu0.c.b16.cont [3/8] 0, 128
      %1010 = vxpose.xlu0.c.b16.cont [4/8] 0, 128
      %1011 = vxpose.xlu0.c.b16.cont [5/8] 0, 128
      %1012 = vxpose.xlu0.c.b16.cont [6/8] 0, 128
      %1013 = vxpose.xlu0.c.b16.cont [7/8] 0, 128
      %1014 = vxpose.xlu0.c.b16.end [8/8] 0, 128
      %v1015 = vpop.trf.xlu0
      %v1016 = vpop.trf.xlu0
      %v1017 = vpop.trf.xlu0
      %v1018 = vpop.trf.xlu0
      %v1019 = vpop.trf.xlu0
      %v1020 = vpop.trf.xlu0
      %v1021 = vpop.trf.xlu0
      %v1022 = vpop.trf.xlu0
      %vm1023 = vcmask 130048
      %v1025 = vsel %vm1023, %v999, 0
      %v1028 = vsel %vm1023, %v1000, 0
      %v1031 = vsel %vm1023, %v1001, 0
      %v1034 = vsel %vm1023, %v1002, 0
      %v1037 = vsel %vm1023, %v1003, 0
      %v1040 = vsel %vm1023, %v1004, 0
      %v1043 = vsel %vm1023, %v1005, 0
      %v1046 = vsel %vm1023, %v1006, 0
      %v1049 = vsel %vm1023, %v1015, 0
      %v1052 = vsel %vm1023, %v1016, 0
      %v1055 = vsel %vm1023, %v1017, 0
      %v1058 = vsel %vm1023, %v1018, 0
      %v1061 = vsel %vm1023, %v1019, 0
      %v1064 = vsel %vm1023, %v1020, 0
      %v1067 = vsel %vm1023, %v1021, 0
      %v1070 = vsel %vm1023, %v1022, 0
      %1072 = vmatprep.subr.bf16.mxu0 %v980
      %1073 = vmatpush1.bf16.msra.mxu0 %v979
      %1074 = vmatprep.subr.bf16.mxu0 0
      %1075 = vmatpush1.bf16.msra.mxu0 0
      %1076 = vmatprep.subr.bf16.mxu0 0
      %1077 = vmatpush1.bf16.msra.mxu0 0
      %1078 = vmatprep.subr.bf16.mxu0 0
      %1079 = vmatpush1.bf16.msra.mxu0 0
      %1080 = vmatprep.subr.bf16.mxu0 0
      %1081 = vmatpush1.bf16.msra.mxu0 0
      %1082 = vmatprep.subr.bf16.mxu0 0
      %1083 = vmatpush1.bf16.msra.mxu0 0
      %1084 = vmatprep.subr.bf16.mxu0 0
      %1085 = vmatpush1.bf16.msra.mxu0 0
      %1086 = vmatprep.subr.bf16.mxu0 0
      %1087 = vmatpush1.bf16.msra.mxu0 0
      %1088 = vmatprep.subr.bf16.mxu0 0
      %1089 = vmatpush1.bf16.msra.mxu0 0
      %1090 = vmatprep.subr.bf16.mxu0 0
      %1091 = vmatpush1.bf16.msra.mxu0 0
      %1092 = vmatprep.subr.bf16.mxu0 0
      %1093 = vmatpush1.bf16.msra.mxu0 0
      %1094 = vmatprep.subr.bf16.mxu0 0
      %1095 = vmatpush1.bf16.msra.mxu0 0
      %1096 = vmatprep.subr.bf16.mxu0 0
      %1097 = vmatpush1.bf16.msra.mxu0 0
      %1098 = vmatprep.subr.bf16.mxu0 0
      %1099 = vmatpush1.bf16.msra.mxu0 0
      %1100 = vmatprep.subr.bf16.mxu0 0
      %1101 = vmatpush1.bf16.msra.mxu0 0
      %1102 = vmatprep.subr.bf16.mxu0 0
      %1103 = vmatpush1.bf16.msra.mxu0 0
      %1104 = vmatprep.mubr.bf16.mxu0 0
      %1105 = vmatmul.mubr.bf16.gmra.mrb[0].mxu0 %v1025
      %v1106 = vpop.f32.mrb[0].mxu0
      %v1107 = vadd.f32 0.0, %v1106
      %v1108 = vpop.f32.mrb[0].mxu0
      %v1109 = vadd.f32 0.0, %v1108
      %v1110 = vpop.f32.mrb[0].mxu0
      %v1111 = vadd.f32 0.0, %v1110
      %v1112 = vpop.f32.mrb[0].mxu0
      %v1113 = vadd.f32 0.0, %v1112
      %1114 = vmatprep.mubr.bf16.mxu0 0
      %1115 = vmatmul.mubr.bf16.gmra.mrb[0].mxu0 %v1028
      %v1116 = vpop.f32.mrb[0].mxu0
      %v1117 = vadd.f32 0.0, %v1116
      %v1118 = vpop.f32.mrb[0].mxu0
      %v1119 = vadd.f32 0.0, %v1118
      %v1120 = vpop.f32.mrb[0].mxu0
      %v1121 = vadd.f32 0.0, %v1120
      %v1122 = vpop.f32.mrb[0].mxu0
      %v1123 = vadd.f32 0.0, %v1122
      %1124 = vmatprep.mubr.bf16.mxu0 0
      %1125 = vmatmul.mubr.bf16.gmra.mrb[0].mxu0 %v1031
      %v1126 = vpop.f32.mrb[0].mxu0
      %v1127 = vadd.f32 0.0, %v1126
      %v1128 = vpop.f32.mrb[0].mxu0
      %v1129 = vadd.f32 0.0, %v1128
      %v1130 = vpop.f32.mrb[0].mxu0
      %v1131 = vadd.f32 0.0, %v1130
      %v1132 = vpop.f32.mrb[0].mxu0
      %v1133 = vadd.f32 0.0, %v1132
      %1134 = vmatprep.mubr.bf16.mxu0 0
      %1135 = vmatmul.mubr.bf16.gmra.mrb[0].mxu0 %v1034
      %v1136 = vpop.f32.mrb[0].mxu0
      %v1137 = vadd.f32 0.0, %v1136
      %v1138 = vpop.f32.mrb[0].mxu0
      %v1139 = vadd.f32 0.0, %v1138
      %v1140 = vpop.f32.mrb[0].mxu0
      %v1141 = vadd.f32 0.0, %v1140
      %v1142 = vpop.f32.mrb[0].mxu0
      %v1143 = vadd.f32 0.0, %v1142
      %1144 = vmatprep.mubr.bf16.mxu0 0
      %1145 = vmatmul.mubr.bf16.gmra.mrb[0].mxu0 %v1037
      %v1146 = vpop.f32.mrb[0].mxu0
      %v1147 = vadd.f32 0.0, %v1146
      %v1148 = vpop.f32.mrb[0].mxu0
      %v1149 = vadd.f32 0.0, %v1148
      %v1150 = vpop.f32.mrb[0].mxu0
      %v1151 = vadd.f32 0.0, %v1150
      %v1152 = vpop.f32.mrb[0].mxu0
      %v1153 = vadd.f32 0.0, %v1152
      %1154 = vmatprep.mubr.bf16.mxu0 0
      %1155 = vmatmul.mubr.bf16.gmra.mrb[0].mxu0 %v1040
      %v1156 = vpop.f32.mrb[0].mxu0
      %v1157 = vadd.f32 0.0, %v1156
      %v1158 = vpop.f32.mrb[0].mxu0
      %v1159 = vadd.f32 0.0, %v1158
      %v1160 = vpop.f32.mrb[0].mxu0
      %v1161 = vadd.f32 0.0, %v1160
      %v1162 = vpop.f32.mrb[0].mxu0
      %v1163 = vadd.f32 0.0, %v1162
      %1164 = vmatprep.mubr.bf16.mxu0 0
      %1165 = vmatmul.mubr.bf16.gmra.mrb[0].mxu0 %v1043
      %v1166 = vpop.f32.mrb[0].mxu0
      %v1167 = vadd.f32 0.0, %v1166
      %v1168 = vpop.f32.mrb[0].mxu0
      %v1169 = vadd.f32 0.0, %v1168
      %v1170 = vpop.f32.mrb[0].mxu0
      %v1171 = vadd.f32 0.0, %v1170
      %v1172 = vpop.f32.mrb[0].mxu0
      %v1173 = vadd.f32 0.0, %v1172
      %1174 = vmatprep.mubr.bf16.mxu0 0
      %1175 = vmatmul.mubr.bf16.gmra.mrb[0].mxu0 %v1046
      %v1176 = vpop.f32.mrb[0].mxu0
      %v1177 = vadd.f32 0.0, %v1176
      %v1178 = vpop.f32.mrb[0].mxu0
      %v1179 = vadd.f32 0.0, %v1178
      %v1180 = vpop.f32.mrb[0].mxu0
      %v1181 = vadd.f32 0.0, %v1180
      %v1182 = vpop.f32.mrb[0].mxu0
      %v1183 = vadd.f32 0.0, %v1182
      %1184 = vmatprep.mubr.bf16.mxu0 0
      %1185 = vmatmul.mubr.bf16.gmra.mrb[0].mxu0 %v1049
      %v1186 = vpop.f32.mrb[0].mxu0
      %v1187 = vadd.f32 0.0, %v1186
      %v1188 = vpop.f32.mrb[0].mxu0
      %v1189 = vadd.f32 0.0, %v1188
      %v1190 = vpop.f32.mrb[0].mxu0
      %v1191 = vadd.f32 0.0, %v1190
      %v1192 = vpop.f32.mrb[0].mxu0
      %v1193 = vadd.f32 0.0, %v1192
      %1194 = vmatprep.mubr.bf16.mxu0 0
      %1195 = vmatmul.mubr.bf16.gmra.mrb[0].mxu0 %v1052
      %v1196 = vpop.f32.mrb[0].mxu0
      %v1197 = vadd.f32 0.0, %v1196
      %v1198 = vpop.f32.mrb[0].mxu0
      %v1199 = vadd.f32 0.0, %v1198
      %v1200 = vpop.f32.mrb[0].mxu0
      %v1201 = vadd.f32 0.0, %v1200
      %v1202 = vpop.f32.mrb[0].mxu0
      %v1203 = vadd.f32 0.0, %v1202
      %1204 = vmatprep.mubr.bf16.mxu0 0
      %1205 = vmatmul.mubr.bf16.gmra.mrb[0].mxu0 %v1055
      %v1206 = vpop.f32.mrb[0].mxu0
      %v1207 = vadd.f32 0.0, %v1206
      %v1208 = vpop.f32.mrb[0].mxu0
      %v1209 = vadd.f32 0.0, %v1208
      %v1210 = vpop.f32.mrb[0].mxu0
      %v1211 = vadd.f32 0.0, %v1210
      %v1212 = vpop.f32.mrb[0].mxu0
      %v1213 = vadd.f32 0.0, %v1212
      %1214 = vmatprep.mubr.bf16.mxu0 0
      %1215 = vmatmul.mubr.bf16.gmra.mrb[0].mxu0 %v1058
      %v1216 = vpop.f32.mrb[0].mxu0
      %v1217 = vadd.f32 0.0, %v1216
      %v1218 = vpop.f32.mrb[0].mxu0
      %v1219 = vadd.f32 0.0, %v1218
      %v1220 = vpop.f32.mrb[0].mxu0
      %v1221 = vadd.f32 0.0, %v1220
      %v1222 = vpop.f32.mrb[0].mxu0
      %v1223 = vadd.f32 0.0, %v1222
      %1224 = vmatprep.mubr.bf16.mxu0 0
      %1225 = vmatmul.mubr.bf16.gmra.mrb[0].mxu0 %v1061
      %v1226 = vpop.f32.mrb[0].mxu0
      %v1227 = vadd.f32 0.0, %v1226
      %v1228 = vpop.f32.mrb[0].mxu0
      %v1229 = vadd.f32 0.0, %v1228
      %v1230 = vpop.f32.mrb[0].mxu0
      %v1231 = vadd.f32 0.0, %v1230
      %v1232 = vpop.f32.mrb[0].mxu0
      %v1233 = vadd.f32 0.0, %v1232
      %1234 = vmatprep.mubr.bf16.mxu0 0
      %1235 = vmatmul.mubr.bf16.gmra.mrb[0].mxu0 %v1064
      %v1236 = vpop.f32.mrb[0].mxu0
      %v1237 = vadd.f32 0.0, %v1236
      %v1238 = vpop.f32.mrb[0].mxu0
      %v1239 = vadd.f32 0.0, %v1238
      %v1240 = vpop.f32.mrb[0].mxu0
      %v1241 = vadd.f32 0.0, %v1240
      %v1242 = vpop.f32.mrb[0].mxu0
      %v1243 = vadd.f32 0.0, %v1242
      %1244 = vmatprep.mubr.bf16.mxu0 0
      %1245 = vmatmul.mubr.bf16.gmra.mrb[0].mxu0 %v1067
      %v1246 = vpop.f32.mrb[0].mxu0
      %v1247 = vadd.f32 0.0, %v1246
      %v1248 = vpop.f32.mrb[0].mxu0
      %v1249 = vadd.f32 0.0, %v1248
      %v1250 = vpop.f32.mrb[0].mxu0
      %v1251 = vadd.f32 0.0, %v1250
      %v1252 = vpop.f32.mrb[0].mxu0
      %v1253 = vadd.f32 0.0, %v1252
      %1254 = vmatprep.mubr.bf16.mxu0 0
      %1255 = vmatmul.mubr.bf16.gmra.mrb[0].mxu0 %v1070
      %v1256 = vpop.f32.mrb[0].mxu0
      %v1257 = vadd.f32 0.0, %v1256
      %v1258 = vpop.f32.mrb[0].mxu0
      %v1259 = vadd.f32 0.0, %v1258
      %v1260 = vpop.f32.mrb[0].mxu0
      %v1261 = vadd.f32 0.0, %v1260
      %v1262 = vpop.f32.mrb[0].mxu0
      %v1263 = vadd.f32 0.0, %v1262
      %1264 = vdwg.mxu0
      %v1265 = vmax.f32 %v1107, %v1117
      %v1266 = vmax.f32 %v1111, %v1121
      %v1267 = vmax.f32 %v1265, %v1127
      %v1268 = vmax.f32 %v1266, %v1131
      %v1269 = vmax.f32 %v1267, %v1137
      %v1270 = vmax.f32 %v1268, %v1141
      %v1271 = vmax.f32 %v1269, %v1147
      %v1272 = vmax.f32 %v1270, %v1151
      %v1273 = vmax.f32 %v1271, %v1157
      %v1274 = vmax.f32 %v1272, %v1161
      %v1275 = vmax.f32 %v1273, %v1167
      %v1276 = vmax.f32 %v1274, %v1171
      %v1277 = vmax.f32 %v1275, %v1177
      %v1278 = vmax.f32 %v1276, %v1181
      %v1279 = vmax.f32 %v1277, %v1187
      %v1280 = vmax.f32 %v1278, %v1191
      %v1281 = vmax.f32 %v1279, %v1197
      %v1282 = vmax.f32 %v1280, %v1201
      %v1283 = vmax.f32 %v1281, %v1207
      %v1284 = vmax.f32 %v1282, %v1211
      %v1285 = vmax.f32 %v1283, %v1217
      %v1286 = vmax.f32 %v1284, %v1221
      %v1287 = vmax.f32 %v1285, %v1227
      %v1288 = vmax.f32 %v1286, %v1231
      %v1289 = vmax.f32 %v1287, %v1237
      %v1290 = vmax.f32 %v1288, %v1241
      %v1291 = vmax.f32 %v1289, %v1247
      %v1292 = vmax.f32 %v1290, %v1251
      %v1293 = vmax.f32 %v1291, %v1257
      %v1294 = vmax.f32 %v1292, %v1261
      %v1295 = vmax.f32 %v1293, %v1294
      %v1296 = vrot.slane %v1295, 4
      %v1297 = vmax.f32 %v1295, %v1296
      %v1298 = vrot.slane %v1297, 2
      %v1299 = vmax.f32 %v1297, %v1298
      %v1300 = vrot.slane %v1299, 1
      %v1301 = vmax.f32 %v1299, %v1300
      %v1302 = vmax.f32 %v1109, %v1119
      %v1303 = vmax.f32 %v1113, %v1123
      %v1304 = vmax.f32 %v1302, %v1129
      %v1305 = vmax.f32 %v1303, %v1133
      %v1306 = vmax.f32 %v1304, %v1139
      %v1307 = vmax.f32 %v1305, %v1143
      %v1308 = vmax.f32 %v1306, %v1149
      %v1309 = vmax.f32 %v1307, %v1153
      %v1310 = vmax.f32 %v1308, %v1159
      %v1311 = vmax.f32 %v1309, %v1163
      %v1312 = vmax.f32 %v1310, %v1169
      %v1313 = vmax.f32 %v1311, %v1173
      %v1314 = vmax.f32 %v1312, %v1179
      %v1315 = vmax.f32 %v1313, %v1183
      %v1316 = vmax.f32 %v1314, %v1189
      %v1317 = vmax.f32 %v1315, %v1193
      %v1318 = vmax.f32 %v1316, %v1199
      %v1319 = vmax.f32 %v1317, %v1203
      %v1320 = vmax.f32 %v1318, %v1209
      %v1321 = vmax.f32 %v1319, %v1213
      %v1322 = vmax.f32 %v1320, %v1219
      %v1323 = vmax.f32 %v1321, %v1223
      %v1324 = vmax.f32 %v1322, %v1229
      %v1325 = vmax.f32 %v1323, %v1233
      %v1326 = vmax.f32 %v1324, %v1239
      %v1327 = vmax.f32 %v1325, %v1243
      %v1328 = vmax.f32 %v1326, %v1249
      %v1329 = vmax.f32 %v1327, %v1253
      %v1330 = vmax.f32 %v1328, %v1259
      %v1331 = vmax.f32 %v1329, %v1263
      %v1332 = vmax.f32 %v1330, %v1331
      %v1333 = vrot.slane %v1332, 4
      %v1334 = vmax.f32 %v1332, %v1333
      %v1335 = vrot.slane %v1334, 2
      %v1336 = vmax.f32 %v1334, %v1335
      %v1337 = vrot.slane %v1336, 1
      %v1338 = vmax.f32 %v1336, %v1337
      %v1339 = vsub.f32 %v1107, %v1301
      %v1340 = vsub.f32 %v1109, %v1338
      %v1341 = vsub.f32 %v1111, %v1301
      %v1342 = vsub.f32 %v1113, %v1338
      %v1343 = vsub.f32 %v1117, %v1301
      %v1344 = vsub.f32 %v1119, %v1338
      %v1345 = vsub.f32 %v1121, %v1301
      %v1346 = vsub.f32 %v1123, %v1338
      %v1347 = vsub.f32 %v1127, %v1301
      %v1348 = vsub.f32 %v1129, %v1338
      %v1349 = vsub.f32 %v1131, %v1301
      %v1350 = vsub.f32 %v1133, %v1338
      %v1351 = vsub.f32 %v1137, %v1301
      %v1352 = vsub.f32 %v1139, %v1338
      %v1353 = vsub.f32 %v1141, %v1301
      %v1354 = vsub.f32 %v1143, %v1338
      %v1355 = vsub.f32 %v1147, %v1301
      %v1356 = vsub.f32 %v1149, %v1338
      %v1357 = vsub.f32 %v1151, %v1301
      %v1358 = vsub.f32 %v1153, %v1338
      %v1359 = vsub.f32 %v1157, %v1301
      %v1360 = vsub.f32 %v1159, %v1338
      %v1361 = vsub.f32 %v1161, %v1301
      %v1362 = vsub.f32 %v1163, %v1338
      %v1363 = vsub.f32 %v1167, %v1301
      %v1364 = vsub.f32 %v1169, %v1338
      %v1365 = vsub.f32 %v1171, %v1301
      %v1366 = vsub.f32 %v1173, %v1338
      %v1367 = vsub.f32 %v1177, %v1301
      %v1368 = vsub.f32 %v1179, %v1338
      %v1369 = vsub.f32 %v1181, %v1301
      %v1370 = vsub.f32 %v1183, %v1338
      %v1371 = vsub.f32 %v1187, %v1301
      %v1372 = vsub.f32 %v1189, %v1338
      %v1373 = vsub.f32 %v1191, %v1301
      %v1374 = vsub.f32 %v1193, %v1338
      %v1375 = vsub.f32 %v1197, %v1301
      %v1376 = vsub.f32 %v1199, %v1338
      %v1377 = vsub.f32 %v1201, %v1301
      %v1378 = vsub.f32 %v1203, %v1338
      %v1379 = vsub.f32 %v1207, %v1301
      %v1380 = vsub.f32 %v1209, %v1338
      %v1381 = vsub.f32 %v1211, %v1301
      %v1382 = vsub.f32 %v1213, %v1338
      %v1383 = vsub.f32 %v1217, %v1301
      %v1384 = vsub.f32 %v1219, %v1338
      %v1385 = vsub.f32 %v1221, %v1301
      %v1386 = vsub.f32 %v1223, %v1338
      %v1387 = vsub.f32 %v1227, %v1301
      %v1388 = vsub.f32 %v1229, %v1338
      %v1389 = vsub.f32 %v1231, %v1301
      %v1390 = vsub.f32 %v1233, %v1338
      %v1391 = vsub.f32 %v1237, %v1301
      %v1392 = vsub.f32 %v1239, %v1338
      %v1393 = vsub.f32 %v1241, %v1301
      %v1394 = vsub.f32 %v1243, %v1338
      %v1395 = vsub.f32 %v1247, %v1301
      %v1396 = vsub.f32 %v1249, %v1338
      %v1397 = vsub.f32 %v1251, %v1301
      %v1398 = vsub.f32 %v1253, %v1338
      %v1399 = vsub.f32 %v1257, %v1301
      %v1400 = vsub.f32 %v1259, %v1338
      %v1401 = vsub.f32 %v1261, %v1301
      %v1402 = vsub.f32 %v1263, %v1338
      %v1403 = vmul.f32 %v1339, 1.442695
      %v1404 = vpow.pop %v1403
      %v1405 = vmul.f32 %v1340, 1.442695
      %v1406 = vpow.pop %v1405
      %v1407 = vmul.f32 %v1341, 1.442695
      %v1408 = vpow.pop %v1407
      %v1409 = vmul.f32 %v1342, 1.442695
      %v1410 = vpow.pop %v1409
      %v1411 = vmul.f32 %v1343, 1.442695
      %v1412 = vpow.pop %v1411
      %v1413 = vmul.f32 %v1344, 1.442695
      %v1414 = vpow.pop %v1413
      %v1415 = vmul.f32 %v1345, 1.442695
      %v1416 = vpow.pop %v1415
      %v1417 = vmul.f32 %v1346, 1.442695
      %v1418 = vpow.pop %v1417
      %v1419 = vmul.f32 %v1347, 1.442695
      %v1420 = vpow.pop %v1419
      %v1421 = vmul.f32 %v1348, 1.442695
      %v1422 = vpow.pop %v1421
      %v1423 = vmul.f32 %v1349, 1.442695
      %v1424 = vpow.pop %v1423
      %v1425 = vmul.f32 %v1350, 1.442695
      %v1426 = vpow.pop %v1425
      %v1427 = vmul.f32 %v1351, 1.442695
      %v1428 = vpow.pop %v1427
      %v1429 = vmul.f32 %v1352, 1.442695
      %v1430 = vpow.pop %v1429
      %v1431 = vmul.f32 %v1353, 1.442695
      %v1432 = vpow.pop %v1431
      %v1433 = vmul.f32 %v1354, 1.442695
      %v1434 = vpow.pop %v1433
      %v1435 = vmul.f32 %v1355, 1.442695
      %v1436 = vpow.pop %v1435
      %v1437 = vmul.f32 %v1356, 1.442695
      %v1438 = vpow.pop %v1437
      %v1439 = vmul.f32 %v1357, 1.442695
      %v1440 = vpow.pop %v1439
      %v1441 = vmul.f32 %v1358, 1.442695
      %v1442 = vpow.pop %v1441
      %v1443 = vmul.f32 %v1359, 1.442695
      %v1444 = vpow.pop %v1443
      %v1445 = vmul.f32 %v1360, 1.442695
      %v1446 = vpow.pop %v1445
      %v1447 = vmul.f32 %v1361, 1.442695
      %v1448 = vpow.pop %v1447
      %v1449 = vmul.f32 %v1362, 1.442695
      %v1450 = vpow.pop %v1449
      %v1451 = vmul.f32 %v1363, 1.442695
      %v1452 = vpow.pop %v1451
      %v1453 = vmul.f32 %v1364, 1.442695
      %v1454 = vpow.pop %v1453
      %v1455 = vmul.f32 %v1365, 1.442695
      %v1456 = vpow.pop %v1455
      %v1457 = vmul.f32 %v1366, 1.442695
      %v1458 = vpow.pop %v1457
      %v1459 = vmul.f32 %v1367, 1.442695
      %v1460 = vpow.pop %v1459
      %v1461 = vmul.f32 %v1368, 1.442695
      %v1462 = vpow.pop %v1461
      %v1463 = vmul.f32 %v1369, 1.442695
      %v1464 = vpow.pop %v1463
      %v1465 = vmul.f32 %v1370, 1.442695
      %v1466 = vpow.pop %v1465
      %v1467 = vmul.f32 %v1371, 1.442695
      %v1468 = vpow.pop %v1467
      %v1469 = vmul.f32 %v1372, 1.442695
      %v1470 = vpow.pop %v1469
      %v1471 = vmul.f32 %v1373, 1.442695
      %v1472 = vpow.pop %v1471
      %v1473 = vmul.f32 %v1374, 1.442695
      %v1474 = vpow.pop %v1473
      %v1475 = vmul.f32 %v1375, 1.442695
      %v1476 = vpow.pop %v1475
      %v1477 = vmul.f32 %v1376, 1.442695
      %v1478 = vpow.pop %v1477
      %v1479 = vmul.f32 %v1377, 1.442695
      %v1480 = vpow.pop %v1479
      %v1481 = vmul.f32 %v1378, 1.442695
      %v1482 = vpow.pop %v1481
      %v1483 = vmul.f32 %v1379, 1.442695
      %v1484 = vpow.pop %v1483
      %v1485 = vmul.f32 %v1380, 1.442695
      %v1486 = vpow.pop %v1485
      %v1487 = vmul.f32 %v1381, 1.442695
      %v1488 = vpow.pop %v1487
      %v1489 = vmul.f32 %v1382, 1.442695
      %v1490 = vpow.pop %v1489
      %v1491 = vmul.f32 %v1383, 1.442695
      %v1492 = vpow.pop %v1491
      %v1493 = vmul.f32 %v1384, 1.442695
      %v1494 = vpow.pop %v1493
      %v1495 = vmul.f32 %v1385, 1.442695
      %v1496 = vpow.pop %v1495
      %v1497 = vmul.f32 %v1386, 1.442695
      %v1498 = vpow.pop %v1497
      %v1499 = vmul.f32 %v1387, 1.442695
      %v1500 = vpow.pop %v1499
      %v1501 = vmul.f32 %v1388, 1.442695
      %v1502 = vpow.pop %v1501
      %v1503 = vmul.f32 %v1389, 1.442695
      %v1504 = vpow.pop %v1503
      %v1505 = vmul.f32 %v1390, 1.442695
      %v1506 = vpow.pop %v1505
      %v1507 = vmul.f32 %v1391, 1.442695
      %v1508 = vpow.pop %v1507
      %v1509 = vmul.f32 %v1392, 1.442695
      %v1510 = vpow.pop %v1509
      %v1511 = vmul.f32 %v1393, 1.442695
      %v1512 = vpow.pop %v1511
      %v1513 = vmul.f32 %v1394, 1.442695
      %v1514 = vpow.pop %v1513
      %v1515 = vmul.f32 %v1395, 1.442695
      %v1516 = vpow.pop %v1515
      %v1517 = vmul.f32 %v1396, 1.442695
      %v1518 = vpow.pop %v1517
      %v1519 = vmul.f32 %v1397, 1.442695
      %v1520 = vpow.pop %v1519
      %v1521 = vmul.f32 %v1398, 1.442695
      %v1522 = vpow.pop %v1521
      %v1523 = vmul.f32 %v1399, 1.442695
      %v1524 = vpow.pop %v1523
      %v1525 = vmul.f32 %v1400, 1.442695
      %v1526 = vpow.pop %v1525
      %v1527 = vmul.f32 %v1401, 1.442695
      %v1528 = vpow.pop %v1527
      %v1529 = vmul.f32 %v1402, 1.442695
      %v1530 = vpow.pop %v1529
      %v1531 = vadd.f32 %v1404, %v1408
      %v1532 = vadd.f32 %v1531, %v1412
      %v1533 = vadd.f32 %v1532, %v1416
      %v1534 = vadd.f32 %v1533, %v1420
      %v1535 = vadd.f32 %v1534, %v1424
      %v1536 = vadd.f32 %v1535, %v1428
      %v1537 = vadd.f32 %v1536, %v1432
      %v1538 = vadd.f32 %v1537, %v1436
      %v1539 = vadd.f32 %v1538, %v1440
      %v1540 = vadd.f32 %v1539, %v1444
      %v1541 = vadd.f32 %v1540, %v1448
      %v1542 = vadd.f32 %v1541, %v1452
      %v1543 = vadd.f32 %v1542, %v1456
      %v1544 = vadd.f32 %v1543, %v1460
      %v1545 = vadd.f32 %v1544, %v1464
      %v1546 = vadd.f32 %v1545, %v1468
      %v1547 = vadd.f32 %v1546, %v1472
      %v1548 = vadd.f32 %v1547, %v1476
      %v1549 = vadd.f32 %v1548, %v1480
      %v1550 = vadd.f32 %v1549, %v1484
      %v1551 = vadd.f32 %v1550, %v1488
      %v1552 = vadd.f32 %v1551, %v1492
      %v1553 = vadd.f32 %v1552, %v1496
      %v1554 = vadd.f32 %v1553, %v1500
      %v1555 = vadd.f32 %v1554, %v1504
      %v1556 = vadd.f32 %v1555, %v1508
      %v1557 = vadd.f32 %v1556, %v1512
      %v1558 = vadd.f32 %v1557, %v1516
      %v1559 = vadd.f32 %v1558, %v1520
      %v1560 = vadd.f32 %v1559, %v1524
      %v1561 = vadd.f32 %v1560, %v1528
      %v1562 = vrot.slane %v1561, 4
      %v1563 = vadd.f32 %v1561, %v1562
      %v1564 = vrot.slane %v1563, 2
      %v1565 = vadd.f32 %v1563, %v1564
      %v1566 = vrot.slane %v1565, 1
      %v1567 = vadd.f32 %v1565, %v1566
      %v1568 = vadd.f32 %v1406, %v1410
      %v1569 = vadd.f32 %v1568, %v1414
      %v1570 = vadd.f32 %v1569, %v1418
      %v1571 = vadd.f32 %v1570, %v1422
      %v1572 = vadd.f32 %v1571, %v1426
      %v1573 = vadd.f32 %v1572, %v1430
      %v1574 = vadd.f32 %v1573, %v1434
      %v1575 = vadd.f32 %v1574, %v1438
      %v1576 = vadd.f32 %v1575, %v1442
      %v1577 = vadd.f32 %v1576, %v1446
      %v1578 = vadd.f32 %v1577, %v1450
      %v1579 = vadd.f32 %v1578, %v1454
      %v1580 = vadd.f32 %v1579, %v1458
      %v1581 = vadd.f32 %v1580, %v1462
      %v1582 = vadd.f32 %v1581, %v1466
      %v1583 = vadd.f32 %v1582, %v1470
      %v1584 = vadd.f32 %v1583, %v1474
      %v1585 = vadd.f32 %v1584, %v1478
      %v1586 = vadd.f32 %v1585, %v1482
      %v1587 = vadd.f32 %v1586, %v1486
      %v1588 = vadd.f32 %v1587, %v1490
      %v1589 = vadd.f32 %v1588, %v1494
      %v1590 = vadd.f32 %v1589, %v1498
      %v1591 = vadd.f32 %v1590, %v1502
      %v1592 = vadd.f32 %v1591, %v1506
      %v1593 = vadd.f32 %v1592, %v1510
      %v1594 = vadd.f32 %v1593, %v1514
      %v1595 = vadd.f32 %v1594, %v1518
      %v1596 = vadd.f32 %v1595, %v1522
      %v1597 = vadd.f32 %v1596, %v1526
      %v1598 = vadd.f32 %v1597, %v1530
      %v1599 = vrot.slane %v1598, 4
      %v1600 = vadd.f32 %v1598, %v1599
      %v1601 = vrot.slane %v1600, 2
      %v1602 = vadd.f32 %v1600, %v1601
      %v1603 = vrot.slane %v1602, 1
      %v1604 = vadd.f32 %v1602, %v1603
      %v1605 = vpack.c.bf16 %v1408, %v1404
      %v1606 = vpack.c.bf16 %v1410, %v1406
      %v1607 = vpack.c.bf16 %v1416, %v1412
      %v1608 = vpack.c.bf16 %v1418, %v1414
      %v1609 = vpack.c.bf16 %v1424, %v1420
      %v1610 = vpack.c.bf16 %v1426, %v1422
      %v1611 = vpack.c.bf16 %v1432, %v1428
      %v1612 = vpack.c.bf16 %v1434, %v1430
      %v1613 = vpack.c.bf16 %v1440, %v1436
      %v1614 = vpack.c.bf16 %v1442, %v1438
      %v1615 = vpack.c.bf16 %v1448, %v1444
      %v1616 = vpack.c.bf16 %v1450, %v1446
      %v1617 = vpack.c.bf16 %v1456, %v1452
      %v1618 = vpack.c.bf16 %v1458, %v1454
      %v1619 = vpack.c.bf16 %v1464, %v1460
      %v1620 = vpack.c.bf16 %v1466, %v1462
      %v1621 = vpack.c.bf16 %v1472, %v1468
      %v1622 = vpack.c.bf16 %v1474, %v1470
      %v1623 = vpack.c.bf16 %v1480, %v1476
      %v1624 = vpack.c.bf16 %v1482, %v1478
      %v1625 = vpack.c.bf16 %v1488, %v1484
      %v1626 = vpack.c.bf16 %v1490, %v1486
      %v1627 = vpack.c.bf16 %v1496, %v1492
      %v1628 = vpack.c.bf16 %v1498, %v1494
      %v1629 = vpack.c.bf16 %v1504, %v1500
      %v1630 = vpack.c.bf16 %v1506, %v1502
      %v1631 = vpack.c.bf16 %v1512, %v1508
      %v1632 = vpack.c.bf16 %v1514, %v1510
      %v1633 = vpack.c.bf16 %v1520, %v1516
      %v1634 = vpack.c.bf16 %v1522, %v1518
      %v1635 = vpack.c.bf16 %v1528, %v1524
      %v1636 = vpack.c.bf16 %v1530, %v1526
      %1637 = vmatprep.subr.bf16.mxu0 %v1606
      %1638 = vmatpush1.bf16.msra.mxu0 %v1605
      %1639 = vmatprep.subr.bf16.mxu0 %v1608
      %1640 = vmatpush1.bf16.msra.mxu0 %v1607
      %1641 = vmatprep.subr.bf16.mxu0 %v1610
      %1642 = vmatpush1.bf16.msra.mxu0 %v1609
      %1643 = vmatprep.subr.bf16.mxu0 %v1612
      %1644 = vmatpush1.bf16.msra.mxu0 %v1611
      %1645 = vmatprep.subr.bf16.mxu0 %v1614
      %1646 = vmatpush1.bf16.msra.mxu0 %v1613
      %1647 = vmatprep.subr.bf16.mxu0 %v1616
      %1648 = vmatpush1.bf16.msra.mxu0 %v1615
      %1649 = vmatprep.subr.bf16.mxu0 %v1618
      %1650 = vmatpush1.bf16.msra.mxu0 %v1617
      %1651 = vmatprep.subr.bf16.mxu0 %v1620
      %1652 = vmatpush1.bf16.msra.mxu0 %v1619
      %1653 = vmatprep.subr.bf16.mxu0 %v1622
      %1654 = vmatpush1.bf16.msra.mxu0 %v1621
      %1655 = vmatprep.subr.bf16.mxu0 %v1624
      %1656 = vmatpush1.bf16.msra.mxu0 %v1623
      %1657 = vmatprep.subr.bf16.mxu0 %v1626
      %1658 = vmatpush1.bf16.msra.mxu0 %v1625
      %1659 = vmatprep.subr.bf16.mxu0 %v1628
      %1660 = vmatpush1.bf16.msra.mxu0 %v1627
      %1661 = vmatprep.subr.bf16.mxu0 %v1630
      %1662 = vmatpush1.bf16.msra.mxu0 %v1629
      %1663 = vmatprep.subr.bf16.mxu0 %v1632
      %1664 = vmatpush1.bf16.msra.mxu0 %v1631
      %1665 = vmatprep.subr.bf16.mxu0 %v1634
      %1666 = vmatpush1.bf16.msra.mxu0 %v1633
      %1667 = vmatprep.subr.bf16.mxu0 %v1636
      %1668 = vmatpush1.bf16.msra.mxu0 %v1635
      %1669 = vmatprep.mubr.bf16.mxu0 %v988
      %1670 = vmatmul.mubr.bf16.gmra.mrb[0].mxu0 %v987
      %v1671 = vpop.f32.mrb[0].mxu0
      %v1672 = vadd.f32 0.0, %v1671
      %v1673 = vpop.f32.mrb[0].mxu0
      %v1674 = vadd.f32 0.0, %v1673
      %v1675 = vpop.f32.mrb[0].mxu0
      %v1676 = vadd.f32 0.0, %v1675
      %v1677 = vpop.f32.mrb[0].mxu0
      %v1678 = vadd.f32 0.0, %v1677
      %1679 = vdwg.mxu0
      %v1680 = vrcp.pop %v1567
      %v1681 = vrcp.pop %v1604
      %v1682 = vmul.f32 %v1672, %v1680
      %v1683 = vmul.f32 %v1674, %v1681
      %v1684 = vmul.f32 %v1676, %v1680
      %v1685 = vmul.f32 %v1678, %v1681
      %v1686 = vpack.c.bf16 %v1684, %v1682
      %v1687 = vpack.c.bf16 %v1685, %v1683
      %1688 = vst [vmem:[#allocation2] sm:$0xff] %v1686
      %1689 = vst [vmem:[#allocation2 + $0x8] sm:$0xff] %v1687
      %1690 = vxpose.xlu0.c.b16.start [1/8] %v985, 128
      %1691 = vxpose.xlu0.c.b16.cont [2/8] 0, 128
      %1692 = vxpose.xlu0.c.b16.cont [3/8] 0, 128
      %1693 = vxpose.xlu0.c.b16.cont [4/8] 0, 128
      %1694 = vxpose.xlu0.c.b16.cont [5/8] 0, 128
      %1695 = vxpose.xlu0.c.b16.cont [6/8] 0, 128
      %1696 = vxpose.xlu0.c.b16.cont [7/8] 0, 128
      %1697 = vxpose.xlu0.c.b16.end [8/8] 0, 128
      %v1698 = vpop.trf.xlu0
      %v1699 = vpop.trf.xlu0
      %v1700 = vpop.trf.xlu0
      %v1701 = vpop.trf.xlu0
      %v1702 = vpop.trf.xlu0
      %v1703 = vpop.trf.xlu0
      %v1704 = vpop.trf.xlu0
      %v1705 = vpop.trf.xlu0
      %1706 = vxpose.xlu0.c.b16.start [1/8] %v986, 128
      %1707 = vxpose.xlu0.c.b16.cont [2/8] 0, 128
      %1708 = vxpose.xlu0.c.b16.cont [3/8] 0, 128
      %1709 = vxpose.xlu0.c.b16.cont [4/8] 0, 128
      %1710 = vxpose.xlu0.c.b16.cont [5/8] 0, 128
      %1711 = vxpose.xlu0.c.b16.cont [6/8] 0, 128
      %1712 = vxpose.xlu0.c.b16.cont [7/8] 0, 128
      %1713 = vxpose.xlu0.c.b16.end [8/8] 0, 128
      %v1714 = vpop.trf.xlu0
      %v1715 = vpop.trf.xlu0
      %v1716 = vpop.trf.xlu0
      %v1717 = vpop.trf.xlu0
      %v1718 = vpop.trf.xlu0
      %v1719 = vpop.trf.xlu0
      %v1720 = vpop.trf.xlu0
      %v1721 = vpop.trf.xlu0
      %v1723 = vsel %vm1023, %v1698, 0
      %v1726 = vsel %vm1023, %v1699, 0
      %v1729 = vsel %vm1023, %v1700, 0
      %v1732 = vsel %vm1023, %v1701, 0
      %v1735 = vsel %vm1023, %v1702, 0
      %v1738 = vsel %vm1023, %v1703, 0
      %v1741 = vsel %vm1023, %v1704, 0
      %v1744 = vsel %vm1023, %v1705, 0
      %v1747 = vsel %vm1023, %v1714, 0
      %v1750 = vsel %vm1023, %v1715, 0
      %v1753 = vsel %vm1023, %v1716, 0
      %v1756 = vsel %vm1023, %v1717, 0
      %v1759 = vsel %vm1023, %v1718, 0
      %v1762 = vsel %vm1023, %v1719, 0
      %v1765 = vsel %vm1023, %v1720, 0
      %v1768 = vsel %vm1023, %v1721, 0
      %1770 = vmatprep.subr.bf16.mxu0 %v982
      %1771 = vmatpush1.bf16.msra.mxu0 %v981
      %1772 = vmatprep.subr.bf16.mxu0 0
      %1773 = vmatpush1.bf16.msra.mxu0 0
      %1774 = vmatprep.subr.bf16.mxu0 0
      %1775 = vmatpush1.bf16.msra.mxu0 0
      %1776 = vmatprep.subr.bf16.mxu0 0
      %1777 = vmatpush1.bf16.msra.mxu0 0
      %1778 = vmatprep.subr.bf16.mxu0 0
      %1779 = vmatpush1.bf16.msra.mxu0 0
      %1780 = vmatprep.subr.bf16.mxu0 0
      %1781 = vmatpush1.bf16.msra.mxu0 0
      %1782 = vmatprep.subr.bf16.mxu0 0
      %1783 = vmatpush1.bf16.msra.mxu0 0
      %1784 = vmatprep.subr.bf16.mxu0 0
      %1785 = vmatpush1.bf16.msra.mxu0 0
      %1786 = vmatprep.subr.bf16.mxu0 0
      %1787 = vmatpush1.bf16.msra.mxu0 0
      %1788 = vmatprep.subr.bf16.mxu0 0
      %1789 = vmatpush1.bf16.msra.mxu0 0
      %1790 = vmatprep.subr.bf16.mxu0 0
      %1791 = vmatpush1.bf16.msra.mxu0 0
      %1792 = vmatprep.subr.bf16.mxu0 0
      %1793 = vmatpush1.bf16.msra.mxu0 0
      %1794 = vmatprep.subr.bf16.mxu0 0
      %1795 = vmatpush1.bf16.msra.mxu0 0
      %1796 = vmatprep.subr.bf16.mxu0 0
      %1797 = vmatpush1.bf16.msra.mxu0 0
      %1798 = vmatprep.subr.bf16.mxu0 0
      %1799 = vmatpush1.bf16.msra.mxu0 0
      %1800 = vmatprep.subr.bf16.mxu0 0
      %1801 = vmatpush1.bf16.msra.mxu0 0
      %1802 = vmatprep.mubr.bf16.mxu0 0
      %1803 = vmatmul.mubr.bf16.gmra.mrb[0].mxu0 %v1723
      %v1804 = vpop.f32.mrb[0].mxu0
      %v1805 = vadd.f32 0.0, %v1804
      %v1806 = vpop.f32.mrb[0].mxu0
      %v1807 = vadd.f32 0.0, %v1806
      %v1808 = vpop.f32.mrb[0].mxu0
      %v1809 = vadd.f32 0.0, %v1808
      %v1810 = vpop.f32.mrb[0].mxu0
      %v1811 = vadd.f32 0.0, %v1810
      %1812 = vmatprep.mubr.bf16.mxu0 0
      %1813 = vmatmul.mubr.bf16.gmra.mrb[0].mxu0 %v1726
      %v1814 = vpop.f32.mrb[0].mxu0
      %v1815 = vadd.f32 0.0, %v1814
      %v1816 = vpop.f32.mrb[0].mxu0
      %v1817 = vadd.f32 0.0, %v1816
      %v1818 = vpop.f32.mrb[0].mxu0
      %v1819 = vadd.f32 0.0, %v1818
      %v1820 = vpop.f32.mrb[0].mxu0
      %v1821 = vadd.f32 0.0, %v1820
      %1822 = vmatprep.mubr.bf16.mxu0 0
      %1823 = vmatmul.mubr.bf16.gmra.mrb[0].mxu0 %v1729
      %v1824 = vpop.f32.mrb[0].mxu0
      %v1825 = vadd.f32 0.0, %v1824
      %v1826 = vpop.f32.mrb[0].mxu0
      %v1827 = vadd.f32 0.0, %v1826
      %v1828 = vpop.f32.mrb[0].mxu0
      %v1829 = vadd.f32 0.0, %v1828
      %v1830 = vpop.f32.mrb[0].mxu0
      %v1831 = vadd.f32 0.0, %v1830
      %1832 = vmatprep.mubr.bf16.mxu0 0
      %1833 = vmatmul.mubr.bf16.gmra.mrb[0].mxu0 %v1732
      %v1834 = vpop.f32.mrb[0].mxu0
      %v1835 = vadd.f32 0.0, %v1834
      %v1836 = vpop.f32.mrb[0].mxu0
      %v1837 = vadd.f32 0.0, %v1836
      %v1838 = vpop.f32.mrb[0].mxu0
      %v1839 = vadd.f32 0.0, %v1838
      %v1840 = vpop.f32.mrb[0].mxu0
      %v1841 = vadd.f32 0.0, %v1840
      %1842 = vmatprep.mubr.bf16.mxu0 0
      %1843 = vmatmul.mubr.bf16.gmra.mrb[0].mxu0 %v1735
      %v1844 = vpop.f32.mrb[0].mxu0
      %v1845 = vadd.f32 0.0, %v1844
      %v1846 = vpop.f32.mrb[0].mxu0
      %v1847 = vadd.f32 0.0, %v1846
      %v1848 = vpop.f32.mrb[0].mxu0
      %v1849 = vadd.f32 0.0, %v1848
      %v1850 = vpop.f32.mrb[0].mxu0
      %v1851 = vadd.f32 0.0, %v1850
      %1852 = vmatprep.mubr.bf16.mxu0 0
      %1853 = vmatmul.mubr.bf16.gmra.mrb[0].mxu0 %v1738
      %v1854 = vpop.f32.mrb[0].mxu0
      %v1855 = vadd.f32 0.0, %v1854
      %v1856 = vpop.f32.mrb[0].mxu0
      %v1857 = vadd.f32 0.0, %v1856
      %v1858 = vpop.f32.mrb[0].mxu0
      %v1859 = vadd.f32 0.0, %v1858
      %v1860 = vpop.f32.mrb[0].mxu0
      %v1861 = vadd.f32 0.0, %v1860
      %1862 = vmatprep.mubr.bf16.mxu0 0
      %1863 = vmatmul.mubr.bf16.gmra.mrb[0].mxu0 %v1741
      %v1864 = vpop.f32.mrb[0].mxu0
      %v1865 = vadd.f32 0.0, %v1864
      %v1866 = vpop.f32.mrb[0].mxu0
      %v1867 = vadd.f32 0.0, %v1866
      %v1868 = vpop.f32.mrb[0].mxu0
      %v1869 = vadd.f32 0.0, %v1868
      %v1870 = vpop.f32.mrb[0].mxu0
      %v1871 = vadd.f32 0.0, %v1870
      %1872 = vmatprep.mubr.bf16.mxu0 0
      %1873 = vmatmul.mubr.bf16.gmra.mrb[0].mxu0 %v1744
      %v1874 = vpop.f32.mrb[0].mxu0
      %v1875 = vadd.f32 0.0, %v1874
      %v1876 = vpop.f32.mrb[0].mxu0
      %v1877 = vadd.f32 0.0, %v1876
      %v1878 = vpop.f32.mrb[0].mxu0
      %v1879 = vadd.f32 0.0, %v1878
      %v1880 = vpop.f32.mrb[0].mxu0
      %v1881 = vadd.f32 0.0, %v1880
      %1882 = vmatprep.mubr.bf16.mxu0 0
      %1883 = vmatmul.mubr.bf16.gmra.mrb[0].mxu0 %v1747
      %v1884 = vpop.f32.mrb[0].mxu0
      %v1885 = vadd.f32 0.0, %v1884
      %v1886 = vpop.f32.mrb[0].mxu0
      %v1887 = vadd.f32 0.0, %v1886
      %v1888 = vpop.f32.mrb[0].mxu0
      %v1889 = vadd.f32 0.0, %v1888
      %v1890 = vpop.f32.mrb[0].mxu0
      %v1891 = vadd.f32 0.0, %v1890
      %1892 = vmatprep.mubr.bf16.mxu0 0
      %1893 = vmatmul.mubr.bf16.gmra.mrb[0].mxu0 %v1750
      %v1894 = vpop.f32.mrb[0].mxu0
      %v1895 = vadd.f32 0.0, %v1894
      %v1896 = vpop.f32.mrb[0].mxu0
      %v1897 = vadd.f32 0.0, %v1896
      %v1898 = vpop.f32.mrb[0].mxu0
      %v1899 = vadd.f32 0.0, %v1898
      %v1900 = vpop.f32.mrb[0].mxu0
      %v1901 = vadd.f32 0.0, %v1900
      %1902 = vmatprep.mubr.bf16.mxu0 0
      %1903 = vmatmul.mubr.bf16.gmra.mrb[0].mxu0 %v1753
      %v1904 = vpop.f32.mrb[0].mxu0
      %v1905 = vadd.f32 0.0, %v1904
      %v1906 = vpop.f32.mrb[0].mxu0
      %v1907 = vadd.f32 0.0, %v1906
      %v1908 = vpop.f32.mrb[0].mxu0
      %v1909 = vadd.f32 0.0, %v1908
      %v1910 = vpop.f32.mrb[0].mxu0
      %v1911 = vadd.f32 0.0, %v1910
      %1912 = vmatprep.mubr.bf16.mxu0 0
      %1913 = vmatmul.mubr.bf16.gmra.mrb[0].mxu0 %v1756
      %v1914 = vpop.f32.mrb[0].mxu0
      %v1915 = vadd.f32 0.0, %v1914
      %v1916 = vpop.f32.mrb[0].mxu0
      %v1917 = vadd.f32 0.0, %v1916
      %v1918 = vpop.f32.mrb[0].mxu0
      %v1919 = vadd.f32 0.0, %v1918
      %v1920 = vpop.f32.mrb[0].mxu0
      %v1921 = vadd.f32 0.0, %v1920
      %1922 = vmatprep.mubr.bf16.mxu0 0
      %1923 = vmatmul.mubr.bf16.gmra.mrb[0].mxu0 %v1759
      %v1924 = vpop.f32.mrb[0].mxu0
      %v1925 = vadd.f32 0.0, %v1924
      %v1926 = vpop.f32.mrb[0].mxu0
      %v1927 = vadd.f32 0.0, %v1926
      %v1928 = vpop.f32.mrb[0].mxu0
      %v1929 = vadd.f32 0.0, %v1928
      %v1930 = vpop.f32.mrb[0].mxu0
      %v1931 = vadd.f32 0.0, %v1930
      %1932 = vmatprep.mubr.bf16.mxu0 0
      %1933 = vmatmul.mubr.bf16.gmra.mrb[0].mxu0 %v1762
      %v1934 = vpop.f32.mrb[0].mxu0
      %v1935 = vadd.f32 0.0, %v1934
      %v1936 = vpop.f32.mrb[0].mxu0
      %v1937 = vadd.f32 0.0, %v1936
      %v1938 = vpop.f32.mrb[0].mxu0
      %v1939 = vadd.f32 0.0, %v1938
      %v1940 = vpop.f32.mrb[0].mxu0
      %v1941 = vadd.f32 0.0, %v1940
      %1942 = vmatprep.mubr.bf16.mxu0 0
      %1943 = vmatmul.mubr.bf16.gmra.mrb[0].mxu0 %v1765
      %v1944 = vpop.f32.mrb[0].mxu0
      %v1945 = vadd.f32 0.0, %v1944
      %v1946 = vpop.f32.mrb[0].mxu0
      %v1947 = vadd.f32 0.0, %v1946
      %v1948 = vpop.f32.mrb[0].mxu0
      %v1949 = vadd.f32 0.0, %v1948
      %v1950 = vpop.f32.mrb[0].mxu0
      %v1951 = vadd.f32 0.0, %v1950
      %1952 = vmatprep.mubr.bf16.mxu0 0
      %1953 = vmatmul.mubr.bf16.gmra.mrb[0].mxu0 %v1768
      %v1954 = vpop.f32.mrb[0].mxu0
      %v1955 = vadd.f32 0.0, %v1954
      %v1956 = vpop.f32.mrb[0].mxu0
      %v1957 = vadd.f32 0.0, %v1956
      %v1958 = vpop.f32.mrb[0].mxu0
      %v1959 = vadd.f32 0.0, %v1958
      %v1960 = vpop.f32.mrb[0].mxu0
      %v1961 = vadd.f32 0.0, %v1960
      %1962 = vdwg.mxu0
      %v1963 = vmax.f32 %v1805, %v1815
      %v1964 = vmax.f32 %v1809, %v1819
      %v1965 = vmax.f32 %v1963, %v1825
      %v1966 = vmax.f32 %v1964, %v1829
      %v1967 = vmax.f32 %v1965, %v1835
      %v1968 = vmax.f32 %v1966, %v1839
      %v1969 = vmax.f32 %v1967, %v1845
      %v1970 = vmax.f32 %v1968, %v1849
      %v1971 = vmax.f32 %v1969, %v1855
      %v1972 = vmax.f32 %v1970, %v1859
      %v1973 = vmax.f32 %v1971, %v1865
      %v1974 = vmax.f32 %v1972, %v1869
      %v1975 = vmax.f32 %v1973, %v1875
      %v1976 = vmax.f32 %v1974, %v1879
      %v1977 = vmax.f32 %v1975, %v1885
      %v1978 = vmax.f32 %v1976, %v1889
      %v1979 = vmax.f32 %v1977, %v1895
      %v1980 = vmax.f32 %v1978, %v1899
      %v1981 = vmax.f32 %v1979, %v1905
      %v1982 = vmax.f32 %v1980, %v1909
      %v1983 = vmax.f32 %v1981, %v1915
      %v1984 = vmax.f32 %v1982, %v1919
      %v1985 = vmax.f32 %v1983, %v1925
      %v1986 = vmax.f32 %v1984, %v1929
      %v1987 = vmax.f32 %v1985, %v1935
      %v1988 = vmax.f32 %v1986, %v1939
      %v1989 = vmax.f32 %v1987, %v1945
      %v1990 = vmax.f32 %v1988, %v1949
      %v1991 = vmax.f32 %v1989, %v1955
      %v1992 = vmax.f32 %v1990, %v1959
      %v1993 = vmax.f32 %v1991, %v1992
      %v1994 = vrot.slane %v1993, 4
      %v1995 = vmax.f32 %v1993, %v1994
      %v1996 = vrot.slane %v1995, 2
      %v1997 = vmax.f32 %v1995, %v1996
      %v1998 = vrot.slane %v1997, 1
      %v1999 = vmax.f32 %v1997, %v1998
      %v2000 = vmax.f32 %v1807, %v1817
      %v2001 = vmax.f32 %v1811, %v1821
      %v2002 = vmax.f32 %v2000, %v1827
      %v2003 = vmax.f32 %v2001, %v1831
      %v2004 = vmax.f32 %v2002, %v1837
      %v2005 = vmax.f32 %v2003, %v1841
      %v2006 = vmax.f32 %v2004, %v1847
      %v2007 = vmax.f32 %v2005, %v1851
      %v2008 = vmax.f32 %v2006, %v1857
      %v2009 = vmax.f32 %v2007, %v1861
      %v2010 = vmax.f32 %v2008, %v1867
      %v2011 = vmax.f32 %v2009, %v1871
      %v2012 = vmax.f32 %v2010, %v1877
      %v2013 = vmax.f32 %v2011, %v1881
      %v2014 = vmax.f32 %v2012, %v1887
      %v2015 = vmax.f32 %v2013, %v1891
      %v2016 = vmax.f32 %v2014, %v1897
      %v2017 = vmax.f32 %v2015, %v1901
      %v2018 = vmax.f32 %v2016, %v1907
      %v2019 = vmax.f32 %v2017, %v1911
      %v2020 = vmax.f32 %v2018, %v1917
      %v2021 = vmax.f32 %v2019, %v1921
      %v2022 = vmax.f32 %v2020, %v1927
      %v2023 = vmax.f32 %v2021, %v1931
      %v2024 = vmax.f32 %v2022, %v1937
      %v2025 = vmax.f32 %v2023, %v1941
      %v2026 = vmax.f32 %v2024, %v1947
      %v2027 = vmax.f32 %v2025, %v1951
      %v2028 = vmax.f32 %v2026, %v1957
      %v2029 = vmax.f32 %v2027, %v1961
      %v2030 = vmax.f32 %v2028, %v2029
      %v2031 = vrot.slane %v2030, 4
      %v2032 = vmax.f32 %v2030, %v2031
      %v2033 = vrot.slane %v2032, 2
      %v2034 = vmax.f32 %v2032, %v2033
      %v2035 = vrot.slane %v2034, 1
      %v2036 = vmax.f32 %v2034, %v2035
      %v2037 = vsub.f32 %v1805, %v1999
      %v2038 = vsub.f32 %v1807, %v2036
      %v2039 = vsub.f32 %v1809, %v1999
      %v2040 = vsub.f32 %v1811, %v2036
      %v2041 = vsub.f32 %v1815, %v1999
      %v2042 = vsub.f32 %v1817, %v2036
      %v2043 = vsub.f32 %v1819, %v1999
      %v2044 = vsub.f32 %v1821, %v2036
      %v2045 = vsub.f32 %v1825, %v1999
      %v2046 = vsub.f32 %v1827, %v2036
      %v2047 = vsub.f32 %v1829, %v1999
      %v2048 = vsub.f32 %v1831, %v2036
      %v2049 = vsub.f32 %v1835, %v1999
      %v2050 = vsub.f32 %v1837, %v2036
      %v2051 = vsub.f32 %v1839, %v1999
      %v2052 = vsub.f32 %v1841, %v2036
      %v2053 = vsub.f32 %v1845, %v1999
      %v2054 = vsub.f32 %v1847, %v2036
      %v2055 = vsub.f32 %v1849, %v1999
      %v2056 = vsub.f32 %v1851, %v2036
      %v2057 = vsub.f32 %v1855, %v1999
      %v2058 = vsub.f32 %v1857, %v2036
      %v2059 = vsub.f32 %v1859, %v1999
      %v2060 = vsub.f32 %v1861, %v2036
      %v2061 = vsub.f32 %v1865, %v1999
      %v2062 = vsub.f32 %v1867, %v2036
      %v2063 = vsub.f32 %v1869, %v1999
      %v2064 = vsub.f32 %v1871, %v2036
      %v2065 = vsub.f32 %v1875, %v1999
      %v2066 = vsub.f32 %v1877, %v2036
      %v2067 = vsub.f32 %v1879, %v1999
      %v2068 = vsub.f32 %v1881, %v2036
      %v2069 = vsub.f32 %v1885, %v1999
      %v2070 = vsub.f32 %v1887, %v2036
      %v2071 = vsub.f32 %v1889, %v1999
      %v2072 = vsub.f32 %v1891, %v2036
      %v2073 = vsub.f32 %v1895, %v1999
      %v2074 = vsub.f32 %v1897, %v2036
      %v2075 = vsub.f32 %v1899, %v1999
      %v2076 = vsub.f32 %v1901, %v2036
      %v2077 = vsub.f32 %v1905, %v1999
      %v2078 = vsub.f32 %v1907, %v2036
      %v2079 = vsub.f32 %v1909, %v1999
      %v2080 = vsub.f32 %v1911, %v2036
      %v2081 = vsub.f32 %v1915, %v1999
      %v2082 = vsub.f32 %v1917, %v2036
      %v2083 = vsub.f32 %v1919, %v1999
      %v2084 = vsub.f32 %v1921, %v2036
      %v2085 = vsub.f32 %v1925, %v1999
      %v2086 = vsub.f32 %v1927, %v2036
      %v2087 = vsub.f32 %v1929, %v1999
      %v2088 = vsub.f32 %v1931, %v2036
      %v2089 = vsub.f32 %v1935, %v1999
      %v2090 = vsub.f32 %v1937, %v2036
      %v2091 = vsub.f32 %v1939, %v1999
      %v2092 = vsub.f32 %v1941, %v2036
      %v2093 = vsub.f32 %v1945, %v1999
      %v2094 = vsub.f32 %v1947, %v2036
      %v2095 = vsub.f32 %v1949, %v1999
      %v2096 = vsub.f32 %v1951, %v2036
      %v2097 = vsub.f32 %v1955, %v1999
      %v2098 = vsub.f32 %v1957, %v2036
      %v2099 = vsub.f32 %v1959, %v1999
      %v2100 = vsub.f32 %v1961, %v2036
      %v2101 = vmul.f32 %v2037, 1.442695
      %v2102 = vpow.pop %v2101
      %v2103 = vmul.f32 %v2038, 1.442695
      %v2104 = vpow.pop %v2103
      %v2105 = vmul.f32 %v2039, 1.442695
      %v2106 = vpow.pop %v2105
      %v2107 = vmul.f32 %v2040, 1.442695
      %v2108 = vpow.pop %v2107
      %v2109 = vmul.f32 %v2041, 1.442695
      %v2110 = vpow.pop %v2109
      %v2111 = vmul.f32 %v2042, 1.442695
      %v2112 = vpow.pop %v2111
      %v2113 = vmul.f32 %v2043, 1.442695
      %v2114 = vpow.pop %v2113
      %v2115 = vmul.f32 %v2044, 1.442695
      %v2116 = vpow.pop %v2115
      %v2117 = vmul.f32 %v2045, 1.442695
      %v2118 = vpow.pop %v2117
      %v2119 = vmul.f32 %v2046, 1.442695
      %v2120 = vpow.pop %v2119
      %v2121 = vmul.f32 %v2047, 1.442695
      %v2122 = vpow.pop %v2121
      %v2123 = vmul.f32 %v2048, 1.442695
      %v2124 = vpow.pop %v2123
      %v2125 = vmul.f32 %v2049, 1.442695
      %v2126 = vpow.pop %v2125
      %v2127 = vmul.f32 %v2050, 1.442695
      %v2128 = vpow.pop %v2127
      %v2129 = vmul.f32 %v2051, 1.442695
      %v2130 = vpow.pop %v2129
      %v2131 = vmul.f32 %v2052, 1.442695
      %v2132 = vpow.pop %v2131
      %v2133 = vmul.f32 %v2053, 1.442695
      %v2134 = vpow.pop %v2133
      %v2135 = vmul.f32 %v2054, 1.442695
      %v2136 = vpow.pop %v2135
      %v2137 = vmul.f32 %v2055, 1.442695
      %v2138 = vpow.pop %v2137
      %v2139 = vmul.f32 %v2056, 1.442695
      %v2140 = vpow.pop %v2139
      %v2141 = vmul.f32 %v2057, 1.442695
      %v2142 = vpow.pop %v2141
      %v2143 = vmul.f32 %v2058, 1.442695
      %v2144 = vpow.pop %v2143
      %v2145 = vmul.f32 %v2059, 1.442695
      %v2146 = vpow.pop %v2145
      %v2147 = vmul.f32 %v2060, 1.442695
      %v2148 = vpow.pop %v2147
      %v2149 = vmul.f32 %v2061, 1.442695
      %v2150 = vpow.pop %v2149
      %v2151 = vmul.f32 %v2062, 1.442695
      %v2152 = vpow.pop %v2151
      %v2153 = vmul.f32 %v2063, 1.442695
      %v2154 = vpow.pop %v2153
      %v2155 = vmul.f32 %v2064, 1.442695
      %v2156 = vpow.pop %v2155
      %v2157 = vmul.f32 %v2065, 1.442695
      %v2158 = vpow.pop %v2157
      %v2159 = vmul.f32 %v2066, 1.442695
      %v2160 = vpow.pop %v2159
      %v2161 = vmul.f32 %v2067, 1.442695
      %v2162 = vpow.pop %v2161
      %v2163 = vmul.f32 %v2068, 1.442695
      %v2164 = vpow.pop %v2163
      %v2165 = vmul.f32 %v2069, 1.442695
      %v2166 = vpow.pop %v2165
      %v2167 = vmul.f32 %v2070, 1.442695
      %v2168 = vpow.pop %v2167
      %v2169 = vmul.f32 %v2071, 1.442695
      %v2170 = vpow.pop %v2169
      %v2171 = vmul.f32 %v2072, 1.442695
      %v2172 = vpow.pop %v2171
      %v2173 = vmul.f32 %v2073, 1.442695
      %v2174 = vpow.pop %v2173
      %v2175 = vmul.f32 %v2074, 1.442695
      %v2176 = vpow.pop %v2175
      %v2177 = vmul.f32 %v2075, 1.442695
      %v2178 = vpow.pop %v2177
      %v2179 = vmul.f32 %v2076, 1.442695
      %v2180 = vpow.pop %v2179
      %v2181 = vmul.f32 %v2077, 1.442695
      %v2182 = vpow.pop %v2181
      %v2183 = vmul.f32 %v2078, 1.442695
      %v2184 = vpow.pop %v2183
      %v2185 = vmul.f32 %v2079, 1.442695
      %v2186 = vpow.pop %v2185
      %v2187 = vmul.f32 %v2080, 1.442695
      %v2188 = vpow.pop %v2187
      %v2189 = vmul.f32 %v2081, 1.442695
      %v2190 = vpow.pop %v2189
      %v2191 = vmul.f32 %v2082, 1.442695
      %v2192 = vpow.pop %v2191
      %v2193 = vmul.f32 %v2083, 1.442695
      %v2194 = vpow.pop %v2193
      %v2195 = vmul.f32 %v2084, 1.442695
      %v2196 = vpow.pop %v2195
      %v2197 = vmul.f32 %v2085, 1.442695
      %v2198 = vpow.pop %v2197
      %v2199 = vmul.f32 %v2086, 1.442695
      %v2200 = vpow.pop %v2199
      %v2201 = vmul.f32 %v2087, 1.442695
      %v2202 = vpow.pop %v2201
      %v2203 = vmul.f32 %v2088, 1.442695
      %v2204 = vpow.pop %v2203
      %v2205 = vmul.f32 %v2089, 1.442695
      %v2206 = vpow.pop %v2205
      %v2207 = vmul.f32 %v2090, 1.442695
      %v2208 = vpow.pop %v2207
      %v2209 = vmul.f32 %v2091, 1.442695
      %v2210 = vpow.pop %v2209
      %v2211 = vmul.f32 %v2092, 1.442695
      %v2212 = vpow.pop %v2211
      %v2213 = vmul.f32 %v2093, 1.442695
      %v2214 = vpow.pop %v2213
      %v2215 = vmul.f32 %v2094, 1.442695
      %v2216 = vpow.pop %v2215
      %v2217 = vmul.f32 %v2095, 1.442695
      %v2218 = vpow.pop %v2217
      %v2219 = vmul.f32 %v2096, 1.442695
      %v2220 = vpow.pop %v2219
      %v2221 = vmul.f32 %v2097, 1.442695
      %v2222 = vpow.pop %v2221
      %v2223 = vmul.f32 %v2098, 1.442695
      %v2224 = vpow.pop %v2223
      %v2225 = vmul.f32 %v2099, 1.442695
      %v2226 = vpow.pop %v2225
      %v2227 = vmul.f32 %v2100, 1.442695
      %v2228 = vpow.pop %v2227
      %v2229 = vadd.f32 %v2102, %v2106
      %v2230 = vadd.f32 %v2229, %v2110
      %v2231 = vadd.f32 %v2230, %v2114
      %v2232 = vadd.f32 %v2231, %v2118
      %v2233 = vadd.f32 %v2232, %v2122
      %v2234 = vadd.f32 %v2233, %v2126
      %v2235 = vadd.f32 %v2234, %v2130
      %v2236 = vadd.f32 %v2235, %v2134
      %v2237 = vadd.f32 %v2236, %v2138
      %v2238 = vadd.f32 %v2237, %v2142
      %v2239 = vadd.f32 %v2238, %v2146
      %v2240 = vadd.f32 %v2239, %v2150
      %v2241 = vadd.f32 %v2240, %v2154
      %v2242 = vadd.f32 %v2241, %v2158
      %v2243 = vadd.f32 %v2242, %v2162
      %v2244 = vadd.f32 %v2243, %v2166
      %v2245 = vadd.f32 %v2244, %v2170
      %v2246 = vadd.f32 %v2245, %v2174
      %v2247 = vadd.f32 %v2246, %v2178
      %v2248 = vadd.f32 %v2247, %v2182
      %v2249 = vadd.f32 %v2248, %v2186
      %v2250 = vadd.f32 %v2249, %v2190
      %v2251 = vadd.f32 %v2250, %v2194
      %v2252 = vadd.f32 %v2251, %v2198
      %v2253 = vadd.f32 %v2252, %v2202
      %v2254 = vadd.f32 %v2253, %v2206
      %v2255 = vadd.f32 %v2254, %v2210
      %v2256 = vadd.f32 %v2255, %v2214
      %v2257 = vadd.f32 %v2256, %v2218
      %v2258 = vadd.f32 %v2257, %v2222
      %v2259 = vadd.f32 %v2258, %v2226
      %v2260 = vrot.slane %v2259, 4
      %v2261 = vadd.f32 %v2259, %v2260
      %v2262 = vrot.slane %v2261, 2
      %v2263 = vadd.f32 %v2261, %v2262
      %v2264 = vrot.slane %v2263, 1
      %v2265 = vadd.f32 %v2263, %v2264
      %v2266 = vadd.f32 %v2104, %v2108
      %v2267 = vadd.f32 %v2266, %v2112
      %v2268 = vadd.f32 %v2267, %v2116
      %v2269 = vadd.f32 %v2268, %v2120
      %v2270 = vadd.f32 %v2269, %v2124
      %v2271 = vadd.f32 %v2270, %v2128
      %v2272 = vadd.f32 %v2271, %v2132
      %v2273 = vadd.f32 %v2272, %v2136
      %v2274 = vadd.f32 %v2273, %v2140
      %v2275 = vadd.f32 %v2274, %v2144
      %v2276 = vadd.f32 %v2275, %v2148
      %v2277 = vadd.f32 %v2276, %v2152
      %v2278 = vadd.f32 %v2277, %v2156
      %v2279 = vadd.f32 %v2278, %v2160
      %v2280 = vadd.f32 %v2279, %v2164
      %v2281 = vadd.f32 %v2280, %v2168
      %v2282 = vadd.f32 %v2281, %v2172
      %v2283 = vadd.f32 %v2282, %v2176
      %v2284 = vadd.f32 %v2283, %v2180
      %v2285 = vadd.f32 %v2284, %v2184
      %v2286 = vadd.f32 %v2285, %v2188
      %v2287 = vadd.f32 %v2286, %v2192
      %v2288 = vadd.f32 %v2287, %v2196
      %v2289 = vadd.f32 %v2288, %v2200
      %v2290 = vadd.f32 %v2289, %v2204
      %v2291 = vadd.f32 %v2290, %v2208
      %v2292 = vadd.f32 %v2291, %v2212
      %v2293 = vadd.f32 %v2292, %v2216
      %v2294 = vadd.f32 %v2293, %v2220
      %v2295 = vadd.f32 %v2294, %v2224
      %v2296 = vadd.f32 %v2295, %v2228
      %v2297 = vrot.slane %v2296, 4
      %v2298 = vadd.f32 %v2296, %v2297
      %v2299 = vrot.slane %v2298, 2
      %v2300 = vadd.f32 %v2298, %v2299
      %v2301 = vrot.slane %v2300, 1
      %v2302 = vadd.f32 %v2300, %v2301
      %v2303 = vpack.c.bf16 %v2106, %v2102
      %v2304 = vpack.c.bf16 %v2108, %v2104
      %v2305 = vpack.c.bf16 %v2114, %v2110
      %v2306 = vpack.c.bf16 %v2116, %v2112
      %v2307 = vpack.c.bf16 %v2122, %v2118
      %v2308 = vpack.c.bf16 %v2124, %v2120
      %v2309 = vpack.c.bf16 %v2130, %v2126
      %v2310 = vpack.c.bf16 %v2132, %v2128
      %v2311 = vpack.c.bf16 %v2138, %v2134
      %v2312 = vpack.c.bf16 %v2140, %v2136
      %v2313 = vpack.c.bf16 %v2146, %v2142
      %v2314 = vpack.c.bf16 %v2148, %v2144
      %v2315 = vpack.c.bf16 %v2154, %v2150
      %v2316 = vpack.c.bf16 %v2156, %v2152
      %v2317 = vpack.c.bf16 %v2162, %v2158
      %v2318 = vpack.c.bf16 %v2164, %v2160
      %v2319 = vpack.c.bf16 %v2170, %v2166
      %v2320 = vpack.c.bf16 %v2172, %v2168
      %v2321 = vpack.c.bf16 %v2178, %v2174
      %v2322 = vpack.c.bf16 %v2180, %v2176
      %v2323 = vpack.c.bf16 %v2186, %v2182
      %v2324 = vpack.c.bf16 %v2188, %v2184
      %v2325 = vpack.c.bf16 %v2194, %v2190
      %v2326 = vpack.c.bf16 %v2196, %v2192
      %v2327 = vpack.c.bf16 %v2202, %v2198
      %v2328 = vpack.c.bf16 %v2204, %v2200
      %v2329 = vpack.c.bf16 %v2210, %v2206
      %v2330 = vpack.c.bf16 %v2212, %v2208
      %v2331 = vpack.c.bf16 %v2218, %v2214
      %v2332 = vpack.c.bf16 %v2220, %v2216
      %v2333 = vpack.c.bf16 %v2226, %v2222
      %v2334 = vpack.c.bf16 %v2228, %v2224
      %2335 = vmatprep.subr.bf16.mxu0 %v2304
      %2336 = vmatpush1.bf16.msra.mxu0 %v2303
      %2337 = vmatprep.subr.bf16.mxu0 %v2306
      %2338 = vmatpush1.bf16.msra.mxu0 %v2305
      %2339 = vmatprep.subr.bf16.mxu0 %v2308
      %2340 = vmatpush1.bf16.msra.mxu0 %v2307
      %2341 = vmatprep.subr.bf16.mxu0 %v2310
      %2342 = vmatpush1.bf16.msra.mxu0 %v2309
      %2343 = vmatprep.subr.bf16.mxu0 %v2312
      %2344 = vmatpush1.bf16.msra.mxu0 %v2311
      %2345 = vmatprep.subr.bf16.mxu0 %v2314
      %2346 = vmatpush1.bf16.msra.mxu0 %v2313
      %2347 = vmatprep.subr.bf16.mxu0 %v2316
      %2348 = vmatpush1.bf16.msra.mxu0 %v2315
      %2349 = vmatprep.subr.bf16.mxu0 %v2318
      %2350 = vmatpush1.bf16.msra.mxu0 %v2317
      %2351 = vmatprep.subr.bf16.mxu0 %v2320
      %2352 = vmatpush1.bf16.msra.mxu0 %v2319
      %2353 = vmatprep.subr.bf16.mxu0 %v2322
      %2354 = vmatpush1.bf16.msra.mxu0 %v2321
      %2355 = vmatprep.subr.bf16.mxu0 %v2324
      %2356 = vmatpush1.bf16.msra.mxu0 %v2323
      %2357 = vmatprep.subr.bf16.mxu0 %v2326
      %2358 = vmatpush1.bf16.msra.mxu0 %v2325
      %2359 = vmatprep.subr.bf16.mxu0 %v2328
      %2360 = vmatpush1.bf16.msra.mxu0 %v2327
      %2361 = vmatprep.subr.bf16.mxu0 %v2330
      %2362 = vmatpush1.bf16.msra.mxu0 %v2329
      %2363 = vmatprep.subr.bf16.mxu0 %v2332
      %2364 = vmatpush1.bf16.msra.mxu0 %v2331
      %2365 = vmatprep.subr.bf16.mxu0 %v2334
      %2366 = vmatpush1.bf16.msra.mxu0 %v2333
      %2367 = vmatprep.mubr.bf16.mxu0 %v990
      %2368 = vmatmul.mubr.bf16.gmra.mrb[0].mxu0 %v989
      %v2369 = vpop.f32.mrb[0].mxu0
      %v2370 = vadd.f32 0.0, %v2369
      %v2371 = vpop.f32.mrb[0].mxu0
      %v2372 = vadd.f32 0.0, %v2371
      %v2373 = vpop.f32.mrb[0].mxu0
      %v2374 = vadd.f32 0.0, %v2373
      %v2375 = vpop.f32.mrb[0].mxu0
      %v2376 = vadd.f32 0.0, %v2375
      %2377 = vdwg.mxu0
      %v2378 = vrcp.pop %v2265
      %v2379 = vrcp.pop %v2302
      %v2380 = vmul.f32 %v2370, %v2378
      %v2381 = vmul.f32 %v2372, %v2379
      %v2382 = vmul.f32 %v2374, %v2378
      %v2383 = vmul.f32 %v2376, %v2379
      %v2384 = vpack.c.bf16 %v2382, %v2380
      %v2385 = vpack.c.bf16 %v2383, %v2381
      %2386 = vst [vmem:[#allocation2 + $0x10] sm:$0xff] %v2384
      %2387 = vst [vmem:[#allocation2 + $0x18] sm:$0xff] %v2385
      %v2388 = vld [vmem:[#allocation2] sm:$0xff]
      %v2389 = vld [vmem:[#allocation2 + $0x8] sm:$0xff]
      %v2390 = vld [vmem:[#allocation2 + $0x10] sm:$0xff]
      %v2391 = vld [vmem:[#allocation2 + $0x18] sm:$0xff]
      %2393 = vset.pattern.permute.xlu0 0
      %2394 = vperm.xlu0 %2393, %v830
      %v2395 = vpop.permute.xlu0 %2394
      %2398 = vset.pattern.permute.xlu0 0
      %2399 = vperm.xlu0 %2398, %v831
      %v2400 = vpop.permute.xlu0 %2399
      %2403 = vset.pattern.permute.xlu0 0
      %2404 = vperm.xlu0 %2403, %v832
      %v2405 = vpop.permute.xlu0 %2404
      %2408 = vset.pattern.permute.xlu0 0
      %2409 = vperm.xlu0 %2408, %v833
      %v2410 = vpop.permute.xlu0 %2409
      %v2416 = vunpack.c.l.b16 %v826
      %v2417 = vunpack.c.l.b16 %v827
      %v2418 = vunpack.c.l.b16 %v828
      %v2419 = vunpack.c.l.b16 %v829
      %v2420 = vpack.c.b16 %v2417, %v2416
      %v2421 = vpack.c.b16 %v2419, %v2418
      %v2423 = vsel %vm339, %v2420, 0
      %v2426 = vsel %vm339, %v2421, 0
      %2428 = vmatprep.subr.bf16.mxu0 %v2389
      %2429 = vmatpush1.bf16.msra.mxu0 %v2388
      %2430 = vmatprep.subr.bf16.mxu0 %v2391
      %2431 = vmatpush1.bf16.msra.mxu0 %v2390
      %2432 = vmatprep.subr.bf16.mxu0 0
      %2433 = vmatpush1.bf16.msra.mxu0 0
      %2434 = vmatprep.subr.bf16.mxu0 0
      %2435 = vmatpush1.bf16.msra.mxu0 0
      %2436 = vmatprep.subr.bf16.mxu0 0
      %2437 = vmatpush1.bf16.msra.mxu0 0
      %2438 = vmatprep.subr.bf16.mxu0 0
      %2439 = vmatpush1.bf16.msra.mxu0 0
      %2440 = vmatprep.subr.bf16.mxu0 0
      %2441 = vmatpush1.bf16.msra.mxu0 0
      %2442 = vmatprep.subr.bf16.mxu0 0
      %2443 = vmatpush1.bf16.msra.mxu0 0
      %2444 = vmatprep.subr.bf16.mxu0 0
      %2445 = vmatpush1.bf16.msra.mxu0 0
      %2446 = vmatprep.subr.bf16.mxu0 0
      %2447 = vmatpush1.bf16.msra.mxu0 0
      %2448 = vmatprep.subr.bf16.mxu0 0
      %2449 = vmatpush1.bf16.msra.mxu0 0
      %2450 = vmatprep.subr.bf16.mxu0 0
      %2451 = vmatpush1.bf16.msra.mxu0 0
      %2452 = vmatprep.subr.bf16.mxu0 0
      %2453 = vmatpush1.bf16.msra.mxu0 0
      %2454 = vmatprep.subr.bf16.mxu0 0
      %2455 = vmatpush1.bf16.msra.mxu0 0
      %2456 = vmatprep.subr.bf16.mxu0 0
      %2457 = vmatpush1.bf16.msra.mxu0 0
      %2458 = vmatprep.subr.bf16.mxu0 0
      %2459 = vmatpush1.bf16.msra.mxu0 0
      %2460 = vmatprep.mubr.bf16.mxu0 0
      %2461 = vmatmul.mubr.bf16.gmra.mrb[0].mxu0 %v2423
      %v2462 = vpop.f32.mrb[0].mxu0
      %v2463 = vadd.f32 %v2395, %v2462
      %v2464 = vpop.f32.mrb[0].mxu0
      %v2465 = vadd.f32 %v2395, %v2464
      %v2466 = vpop.f32.mrb[0].mxu0
      %v2467 = vadd.f32 %v2400, %v2466
      %v2468 = vpop.f32.mrb[0].mxu0
      %v2469 = vadd.f32 %v2400, %v2468
      %2470 = vmatprep.mubr.bf16.mxu0 0
      %2471 = vmatmul.mubr.bf16.gmra.mrb[0].mxu0 %v2426
      %v2472 = vpop.f32.mrb[0].mxu0
      %v2473 = vadd.f32 %v2405, %v2472
      %v2474 = vpop.f32.mrb[0].mxu0
      %v2475 = vadd.f32 %v2405, %v2474
      %v2476 = vpop.f32.mrb[0].mxu0
      %v2477 = vadd.f32 %v2410, %v2476
      %v2478 = vpop.f32.mrb[0].mxu0
      %v2479 = vadd.f32 %v2410, %v2478
      %2480 = vdwg.mxu0
      %v2481 = vadd.f32 %v2463, %v284
      %v2482 = vadd.f32 %v2465, %v285
      %v2483 = vadd.f32 %v2467, %v286
      %v2484 = vadd.f32 %v2469, %v287
      %v2485 = vadd.f32 %v2473, %v288
      %v2486 = vadd.f32 %v2475, %v289
      %v2487 = vadd.f32 %v2477, %v290
      %v2488 = vadd.f32 %v2479, %v291
      %v2489 = vpack.c.bf16 %v2483, %v2481
      %v2490 = vpack.c.bf16 %v2484, %v2482
      %v2491 = vpack.c.bf16 %v2487, %v2485
      %v2492 = vpack.c.bf16 %v2488, %v2486
      %v2497 = vunpack.c.l.b16 %v2489
      %v2498 = vunpack.c.l.b16 %v2490
      %v2499 = vunpack.c.h.b16 %v2489
      %v2500 = vunpack.c.h.b16 %v2490
      %v2501 = vunpack.c.l.b16 %v2491
      %v2502 = vunpack.c.l.b16 %v2492
      %v2503 = vunpack.c.h.b16 %v2491
      %v2504 = vunpack.c.h.b16 %v2492
      %v2505 = vpack.c.b16 %v2498, %v2497
      %v2506 = vpack.c.b16 %v2500, %v2499
      %v2507 = vpack.c.b16 %v2502, %v2501
      %v2508 = vpack.c.b16 %v2504, %v2503
      %2513 = vst [vmem:[%s278] sm:$0xff] %v2505
      %2514 = vst [vmem:[%s278 + $0x8] sm:$0xff] %v2506
      %2515 = vst [vmem:[%s278 + $0x10] sm:$0xff] %v2507
      %2516 = vst [vmem:[%s278 + $0x18] sm:$0xff] %v2508
      %p2517 = scmp.lt.s32.totalorder %s18, 1
      %s2518 = scalar_select %p2517, %s18, 1
      %s2519 = smul.addr %s2518, 8
      %s2520 = smul.addr %s2519, 4
      %s2521 = scalar_lea.vmem %s7, %s2520
      // Predicated region
      $region49: #{self_attention_pallas.1} parent=47 // pred_check
        %p2522 = pneg %p188
      $region50: #{self_attention_pallas.1} parent=47 // pred_check_branch
        %2524 = sbr.rel (%p2522) target = $region52
      $region51: #{self_attention_pallas.1} parent=47 // pred_region
        _
      $region52: #{self_attention_pallas.1} parent=47 // pred_fallthru
        _
    $region48: #{self_attention_pallas.1} parent=5 // pred_fallthru
      _
    %p2525 = scmp.le.s32.totalorder 2, %s13
    // Predicated region
    $region53: #{self_attention_pallas.1} parent=5 // pred_check
      %p2526 = pneg %p2525
    $region54: #{self_attention_pallas.1} parent=5 // pred_check_branch
      %2528 = sbr.rel (%p2526) target = $region56
    $region55: #{self_attention_pallas.1} parent=5 // pred_region
      %s2529 = ssub.s32 %s13, 2
      // Predicated region
      $region57: #{self_attention_pallas.1} parent=55 // pred_check
        %p2530 = pneg %p194
      $region58: #{self_attention_pallas.1} parent=55 // pred_check_branch
        %2532 = sbr.rel (%p2530) target = $region60
      $region59: #{self_attention_pallas.1} parent=55 // pred_region
        %p2533 = scmp.lt.s32.totalorder %s19, 1
        %s2534 = scalar_select %p2533, %s19, 1
        %s2535 = smul.addr %s2534, 8
        %s2536 = smul.addr %s2535, 4
        %s2537 = scalar_lea.vmem %s7, %s2536
      $region60: #{self_attention_pallas.1} parent=55 // pred_fallthru
        _
    $region56: #{self_attention_pallas.1} parent=5 // pred_fallthru
      _
  $region6: #{self_attention_pallas.1} parent=0 // loop_footer
    %s17 = sadd.s32 1, %s13
  $region7: #{self_attention_pallas.1} parent=0 // loop_footer_branch
    %12 = sbr.rel target = $region3
  $region8: #{self_attention_pallas.1} parent=0 // loop_exit
    _

</llo_original>
